<compile_context>
chip_gen: v6e
topology: v6e:2x2x1
jax: 0.10.0
libtpu: 0.0.40
codegen_flags: <defaults>
</compile_context>

<pallas_src>
import functools

import jax
import jax.numpy as jnp
from jax.experimental import pallas as pl
from jax.experimental.pallas import tpu as pltpu

_LANE = 128
_SUBLANE = 8
_BN_EPS = 1e-5


def _round_up(n, m):
    return ((n + m - 1) // m) * m


def _pad_to(arr, shape):
    pads = [(0, t - s) for s, t in zip(arr.shape, shape)]
    return jnp.pad(arr, pads)


def _graphsage_kernel(a_ref, x_ref,
                      w1s_ref, w1n_ref, b1_ref, gamma_ref, beta_ref,
                      w2s_ref, w2n_ref, b2_ref,
                      w3s_ref, w3n_ref, b3_ref,
                      out_ref, *, n_valid):
    A = a_ref[...]                       # [Np, Np] bf16 row-normalized adjacency
    X = x_ref[...]                       # [Np, FP] bf16 padded node features
    n_pad = A.shape[0]

    # ---- SAGEConv 1 : two accumulating bf16 K=128 dots (no lane concat) ---
    x_ag = jnp.dot(A, X, preferred_element_type=jnp.float32).astype(jnp.bfloat16)
    h = (jnp.dot(X, w1s_ref[...], preferred_element_type=jnp.float32)
         + jnp.dot(x_ag, w1n_ref[...], preferred_element_type=jnp.float32)
         + b1_ref[...])
    h = jnp.maximum(h, 0.0)                                        # ReLU
    # Dropout (inference mode) -> identity.

    # ---- BatchNorm1d (batch statistics, one-pass var, clamped) ------------
    if n_valid != n_pad:
        # Keep zero-padded rows out of the statistics.
        row_ids = jax.lax.broadcasted_iota(jnp.int32, (n_pad, 1), 0)
        h = jnp.where(row_ids < n_valid, h, 0.0)
    inv_n = 1.0 / float(n_valid)
    mean = jnp.sum(h, axis=0, keepdims=True) * inv_n
    ex2 = jnp.sum(h * h, axis=0, keepdims=True) * inv_n
    var = jnp.maximum(ex2 - mean * mean, 0.0)        # avoid tiny negatives -> NaN
    h = (h - mean) * jax.lax.rsqrt(var + _BN_EPS) * gamma_ref[...] + beta_ref[...]

    # ---- SAGEConv 2 --------------------------------------------------------
    h_b = h.astype(jnp.bfloat16)
    h_ag = jnp.dot(A, h_b, preferred_element_type=jnp.float32).astype(jnp.bfloat16)
    h2 = (jnp.dot(h_b, w2s_ref[...], preferred_element_type=jnp.float32)
          + jnp.dot(h_ag, w2n_ref[...], preferred_element_type=jnp.float32)
          + b2_ref[...])
    h2 = jnp.maximum(h2, 0.0)                                      # ReLU
    # Dropout (inference mode) -> identity.

    # ---- SAGEConv 3 (no activation) ----------------------------------------
    h2_b = h2.astype(jnp.bfloat16)
    h2_ag = jnp.dot(A, h2_b, preferred_element_type=jnp.float32).astype(jnp.bfloat16)
    out = (jnp.dot(h2_b, w3s_ref[...], preferred_element_type=jnp.float32)
           + jnp.dot(h2_ag, w3n_ref[...], preferred_element_type=jnp.float32)
           + b3_ref[...])
    out_ref[...] = out.astype(out_ref.dtype)


def _vmem_limit_bytes(n_pad, fp, hp, cp):
    """Rough VMEM footprint (inputs + f32 temporaries) with headroom."""
    a_bytes = 2 * n_pad * n_pad                                  # bf16 A
    x_bytes = 2 * n_pad * fp                                     # bf16 X
    w_bytes = 2 * (2 * fp * hp + 2 * hp * hp + 2 * hp * cp)      # bf16 weights
    small = 4 * _SUBLANE * (4 * hp + cp)                         # biases/gamma/beta (padded)
    out_bytes = 4 * n_pad * cp                                   # f32 output
    temps = 4 * n_pad * max(fp, hp, cp) * 6                      # f32 activations/aggregates
    est = a_bytes + x_bytes + w_bytes + small + out_bytes + temps + (4 << 20)
    return int(min(max(est, 32 << 20), 120 << 20))


# --------------------------- one-time preparation ---------------------------

def prepare_params(params):
    """Pad + bf16-cast weights once (hoisted out of the per-call path)."""
    in_feats, h_feats = params["w1_self"].shape
    num_classes = params["w3_self"].shape[1]
    fp = _round_up(in_feats, _LANE)
    hp = _round_up(h_feats, _LANE)
    cp = _round_up(num_classes, _LANE)
    bf = jnp.bfloat16
    return {
        "w1s": _pad_to(params["w1_self"], (fp, hp)).astype(bf),
        "w1n": _pad_to(params["w1_neigh"], (fp, hp)).astype(bf),
        "b1": _pad_to(params["b1"], (1, hp)),
        "gamma": _pad_to(params["gamma"], (1, hp)),
        "beta": _pad_to(params["beta"], (1, hp)),
        "w2s": _pad_to(params["w2_self"], (hp, hp)).astype(bf),
        "w2n": _pad_to(params["w2_neigh"], (hp, hp)).astype(bf),
        "b2": _pad_to(params["b2"], (1, hp)),
        "w3s": _pad_to(params["w3_self"], (hp, cp)).astype(bf),
        "w3n": _pad_to(params["w3_neigh"], (hp, cp)).astype(bf),
        "b3": _pad_to(params["b3"], (1, cp)),
    }


def prepare_adjacency(a_mean):
    """Row-normalized mean-aggregation operator -> padded bf16 (done once)."""
    n = a_mean.shape[0]
    n_pad = _round_up(n, _SUBLANE)
    return _pad_to(a_mean.astype(jnp.float32), (n_pad, n_pad)).astype(jnp.bfloat16)


def prepare_features(x):
    """Node features -> lane-padded bf16 (done once)."""
    n, in_feats = x.shape
    n_pad = _round_up(n, _SUBLANE)
    fp = _round_up(in_feats, _LANE)
    return _pad_to(x.astype(jnp.float32), (n_pad, fp)).astype(jnp.bfloat16)


# --------------------------------- forward ----------------------------------

def graphsage_forward(a_pad, x_pad, prepped, *, n_valid, num_classes):
    """Fused GraphSAGE forward; all operands already padded/cast (see prepare_*)."""
    n_pad = a_pad.shape[0]
    fp = x_pad.shape[1]
    hp = prepped["w1s"].shape[1]
    cp = prepped["w3s"].shape[1]

    inputs = (a_pad, x_pad,
              prepped["w1s"], prepped["w1n"], prepped["b1"],
              prepped["gamma"], prepped["beta"],
              prepped["w2s"], prepped["w2n"], prepped["b2"],
              prepped["w3s"], prepped["w3n"], prepped["b3"])

    kernel = functools.partial(_graphsage_kernel, n_valid=n_valid)

    out_pad = pl.pallas_call(
        kernel,
        out_shape=jax.ShapeDtypeStruct((n_pad, cp), jnp.float32),
        in_specs=[pl.BlockSpec(memory_space=pltpu.MemorySpace.VMEM)
                  for _ in inputs],
        out_specs=pl.BlockSpec(memory_space=pltpu.MemorySpace.VMEM),
        compiler_params=pltpu.CompilerParams(
            vmem_limit_bytes=_vmem_limit_bytes(n_pad, fp, hp, cp)),
    )(*inputs)

    return out_pad[:n_valid, :num_classes]


# ------------------------------ params / reference ---------------------------

def init_params(key, in_feats, h_feats, num_classes):
    ks = jax.random.split(key, 9)
    scale = 0.1
    return {
        "w1_self":  scale * jax.random.normal(ks[0], (in_feats, h_feats), jnp.float32),
        "w1_neigh": scale * jax.random.normal(ks[1], (in_feats, h_feats), jnp.float32),
        "b1":       scale * jax.random.normal(ks[2], (1, h_feats), jnp.float32),
        "gamma":    jnp.ones((1, h_feats), jnp.float32),
        "beta":     jnp.zeros((1, h_feats), jnp.float32),
        "w2_self":  scale * jax.random.normal(ks[3], (h_feats, h_feats), jnp.float32),
        "w2_neigh": scale * jax.random.normal(ks[4], (h_feats, h_feats), jnp.float32),
        "b2":       scale * jax.random.normal(ks[5], (1, h_feats), jnp.float32),
        "w3_self":  scale * jax.random.normal(ks[6], (h_feats, num_classes), jnp.float32),
        "w3_neigh": scale * jax.random.normal(ks[7], (h_feats, num_classes), jnp.float32),
        "b3":       scale * jax.random.normal(ks[8], (1, num_classes), jnp.float32),
    }


def _reference_forward(a_mean, x, p):
    """Pure-JAX f32 reference (PyTorch semantics, batch-stat BN, eval dropout)."""
    h = x @ p["w1_self"] + (a_mean @ x) @ p["w1_neigh"] + p["b1"]
    h = jnp.maximum(h, 0.0)
    mean = jnp.mean(h, axis=0, keepdims=True)
    var = jnp.mean((h - mean) ** 2, axis=0, keepdims=True)
    h = (h - mean) / jnp.sqrt(var + _BN_EPS) * p["gamma"] + p["beta"]
    h2 = h @ p["w2_self"] + (a_mean @ h) @ p["w2_neigh"] + p["b2"]
    h2 = jnp.maximum(h2, 0.0)
    out = h2 @ p["w3_self"] + (a_mean @ h2) @ p["w3_neigh"] + p["b3"]
    return out


if __name__ == "__main__":
    key = jax.random.PRNGKey(0)
    k_graph, k_feat, k_param = jax.random.split(key, 3)

    N, in_feats, h_feats, num_classes = 64, 16, 32, 4

    # Random graph.  DGL SAGEConv('mean') excludes the node itself and clamps
    # the degree to >= 1 (isolated nodes aggregate zeros): no self-loops here.
    adj = (jax.random.uniform(k_graph, (N, N)) < 0.1).astype(jnp.float32)
    adj = adj * (1.0 - jnp.eye(N, dtype=jnp.float32))
    deg = jnp.maximum(jnp.sum(adj, axis=1, keepdims=True), 1.0)
    a_mean = adj / deg                                   # [N, N] mean-agg operator

    x = jax.random.normal(k_feat, (N, in_feats), jnp.float32)
    params = init_params(k_param, in_feats, h_feats, num_classes)

    # One-time prep (padding / stacking / bf16 casting hoisted out of forward).
    prepped = prepare_params(params)
    a_pad = prepare_adjacency(a_mean)
    x_pad = prepare_features(x)

    out = graphsage_forward(a_pad, x_pad, prepped,
                            n_valid=N, num_classes=num_classes)
    jax.block_until_ready(out)

    ref = _reference_forward(a_mean, x, params)
    assert out.shape == (N, num_classes)
    # All matmuls (aggregation + projections) run bf16 with f32 accumulation,
    # so compare against the pure-f32 reference with a bf16-level bound.
    assert jnp.allclose(out, ref, atol=5e-2, rtol=5e-2), "mismatch vs reference"

    print("KERNEL_OK")
</pallas_src>

<mosaic_0001>
module attributes {stable_mosaic.version = 11 : i64} {
  func.func @_graphsage_kernel(%arg0: memref<64x64xbf16, #tpu.memory_space<vmem>>, %arg1: memref<64x128xbf16, #tpu.memory_space<vmem>>, %arg2: memref<128x128xbf16, #tpu.memory_space<vmem>>, %arg3: memref<128x128xbf16, #tpu.memory_space<vmem>>, %arg4: memref<1x128xf32, #tpu.memory_space<vmem>>, %arg5: memref<1x128xf32, #tpu.memory_space<vmem>>, %arg6: memref<1x128xf32, #tpu.memory_space<vmem>>, %arg7: memref<128x128xbf16, #tpu.memory_space<vmem>>, %arg8: memref<128x128xbf16, #tpu.memory_space<vmem>>, %arg9: memref<1x128xf32, #tpu.memory_space<vmem>>, %arg10: memref<128x128xbf16, #tpu.memory_space<vmem>>, %arg11: memref<128x128xbf16, #tpu.memory_space<vmem>>, %arg12: memref<1x128xf32, #tpu.memory_space<vmem>>, %arg13: memref<64x128xf32, #tpu.memory_space<vmem>>) attributes {dimension_semantics = [], scalar_prefetch = 0 : i64, scratch_operands = 0 : i64, tpu.core_type = #tpu.core_type<tc>} {
    %c0 = arith.constant 0 : index
    %c0_0 = arith.constant 0 : index
    %0 = vector.load %arg0[%c0, %c0_0] : memref<64x64xbf16, #tpu.memory_space<vmem>>, vector<64x64xbf16>
    %c0_1 = arith.constant 0 : index
    %c0_2 = arith.constant 0 : index
    %1 = vector.load %arg1[%c0_1, %c0_2] : memref<64x128xbf16, #tpu.memory_space<vmem>>, vector<64x128xbf16>
    %cst = arith.constant dense<0.000000e+00> : vector<64x128xf32>
    %2 = tpu.matmul %0, %1, %cst {dimension_numbers = #tpu.dot_dimension_numbers<[1], [0], [0], [1], [0, 0, 1, 1], [], []>} : vector<64x64xbf16>, vector<64x128xbf16>, vector<64x128xf32> -> vector<64x128xf32>
    %3 = arith.truncf %2 : vector<64x128xf32> to vector<64x128xbf16>
    %c0_3 = arith.constant 0 : index
    %c0_4 = arith.constant 0 : index
    %4 = vector.load %arg2[%c0_3, %c0_4] : memref<128x128xbf16, #tpu.memory_space<vmem>>, vector<128x128xbf16>
    %cst_5 = arith.constant dense<0.000000e+00> : vector<64x128xf32>
    %5 = tpu.matmul %1, %4, %cst_5 {dimension_numbers = #tpu.dot_dimension_numbers<[1], [0], [0], [1], [0, 0, 1, 1], [], []>} : vector<64x128xbf16>, vector<128x128xbf16>, vector<64x128xf32> -> vector<64x128xf32>
    %c0_6 = arith.constant 0 : index
    %c0_7 = arith.constant 0 : index
    %6 = vector.load %arg3[%c0_6, %c0_7] : memref<128x128xbf16, #tpu.memory_space<vmem>>, vector<128x128xbf16>
    %cst_8 = arith.constant dense<0.000000e+00> : vector<64x128xf32>
    %7 = tpu.matmul %3, %6, %cst_8 {dimension_numbers = #tpu.dot_dimension_numbers<[1], [0], [0], [1], [0, 0, 1, 1], [], []>} : vector<64x128xbf16>, vector<128x128xbf16>, vector<64x128xf32> -> vector<64x128xf32>
    %8 = arith.addf %5, %7 : vector<64x128xf32>
    %c0_9 = arith.constant 0 : index
    %c0_10 = arith.constant 0 : index
    %9 = vector.load %arg4[%c0_9, %c0_10] : memref<1x128xf32, #tpu.memory_space<vmem>>, vector<1x128xf32>
    %10 = vector.broadcast %9 : vector<1x128xf32> to vector<64x128xf32>
    %11 = arith.addf %8, %10 : vector<64x128xf32>
    %cst_11 = arith.constant 0.000000e+00 : f32
    %12 = vector.broadcast %cst_11 : f32 to vector<64x128xf32>
    %13 = arith.maximumf %11, %12 : vector<64x128xf32>
    %cst_12 = arith.constant dense<0.000000e+00> : vector<128xf32>
    %14 = vector.multi_reduction <add>, %13, %cst_12 [0] : vector<64x128xf32> to vector<128xf32>
    %15 = vector.shape_cast %14 : vector<128xf32> to vector<1x128xf32>
    %cst_13 = arith.constant 1.562500e-02 : f32
    %16 = vector.broadcast %cst_13 : f32 to vector<1x128xf32>
    %17 = arith.mulf %15, %16 : vector<1x128xf32>
    %18 = arith.mulf %13, %13 : vector<64x128xf32>
    %cst_14 = arith.constant dense<0.000000e+00> : vector<128xf32>
    %19 = vector.multi_reduction <add>, %18, %cst_14 [0] : vector<64x128xf32> to vector<128xf32>
    %20 = vector.shape_cast %19 : vector<128xf32> to vector<1x128xf32>
    %cst_15 = arith.constant 1.562500e-02 : f32
    %21 = vector.broadcast %cst_15 : f32 to vector<1x128xf32>
    %22 = arith.mulf %20, %21 : vector<1x128xf32>
    %23 = arith.mulf %17, %17 : vector<1x128xf32>
    %24 = arith.subf %22, %23 : vector<1x128xf32>
    %cst_16 = arith.constant 0.000000e+00 : f32
    %25 = vector.broadcast %cst_16 : f32 to vector<1x128xf32>
    %26 = arith.maximumf %24, %25 : vector<1x128xf32>
    %27 = vector.broadcast %17 : vector<1x128xf32> to vector<64x128xf32>
    %28 = arith.subf %13, %27 : vector<64x128xf32>
    %cst_17 = arith.constant 9.99999974E-6 : f32
    %29 = vector.broadcast %cst_17 : f32 to vector<1x128xf32>
    %30 = arith.addf %26, %29 : vector<1x128xf32>
    %31 = math.rsqrt %30 : vector<1x128xf32>
    %32 = vector.broadcast %31 : vector<1x128xf32> to vector<64x128xf32>
    %33 = arith.mulf %28, %32 : vector<64x128xf32>
    %c0_18 = arith.constant 0 : index
    %c0_19 = arith.constant 0 : index
    %34 = vector.load %arg5[%c0_18, %c0_19] : memref<1x128xf32, #tpu.memory_space<vmem>>, vector<1x128xf32>
    %35 = vector.broadcast %34 : vector<1x128xf32> to vector<64x128xf32>
    %36 = arith.mulf %33, %35 : vector<64x128xf32>
    %c0_20 = arith.constant 0 : index
    %c0_21 = arith.constant 0 : index
    %37 = vector.load %arg6[%c0_20, %c0_21] : memref<1x128xf32, #tpu.memory_space<vmem>>, vector<1x128xf32>
    %38 = vector.broadcast %37 : vector<1x128xf32> to vector<64x128xf32>
    %39 = arith.addf %36, %38 : vector<64x128xf32>
    %40 = arith.truncf %39 : vector<64x128xf32> to vector<64x128xbf16>
    %cst_22 = arith.constant dense<0.000000e+00> : vector<64x128xf32>
    %41 = tpu.matmul %0, %40, %cst_22 {dimension_numbers = #tpu.dot_dimension_numbers<[1], [0], [0], [1], [0, 0, 1, 1], [], []>} : vector<64x64xbf16>, vector<64x128xbf16>, vector<64x128xf32> -> vector<64x128xf32>
    %42 = arith.truncf %41 : vector<64x128xf32> to vector<64x128xbf16>
    %c0_23 = arith.constant 0 : index
    %c0_24 = arith.constant 0 : index
    %43 = vector.load %arg7[%c0_23, %c0_24] : memref<128x128xbf16, #tpu.memory_space<vmem>>, vector<128x128xbf16>
    %cst_25 = arith.constant dense<0.000000e+00> : vector<64x128xf32>
    %44 = tpu.matmul %40, %43, %cst_25 {dimension_numbers = #tpu.dot_dimension_numbers<[1], [0], [0], [1], [0, 0, 1, 1], [], []>} : vector<64x128xbf16>, vector<128x128xbf16>, vector<64x128xf32> -> vector<64x128xf32>
    %c0_26 = arith.constant 0 : index
    %c0_27 = arith.constant 0 : index
    %45 = vector.load %arg8[%c0_26, %c0_27] : memref<128x128xbf16, #tpu.memory_space<vmem>>, vector<128x128xbf16>
    %cst_28 = arith.constant dense<0.000000e+00> : vector<64x128xf32>
    %46 = tpu.matmul %42, %45, %cst_28 {dimension_numbers = #tpu.dot_dimension_numbers<[1], [0], [0], [1], [0, 0, 1, 1], [], []>} : vector<64x128xbf16>, vector<128x128xbf16>, vector<64x128xf32> -> vector<64x128xf32>
    %47 = arith.addf %44, %46 : vector<64x128xf32>
    %c0_29 = arith.constant 0 : index
    %c0_30 = arith.constant 0 : index
    %48 = vector.load %arg9[%c0_29, %c0_30] : memref<1x128xf32, #tpu.memory_space<vmem>>, vector<1x128xf32>
    %49 = vector.broadcast %48 : vector<1x128xf32> to vector<64x128xf32>
    %50 = arith.addf %47, %49 : vector<64x128xf32>
    %cst_31 = arith.constant 0.000000e+00 : f32
    %51 = vector.broadcast %cst_31 : f32 to vector<64x128xf32>
    %52 = arith.maximumf %50, %51 : vector<64x128xf32>
    %53 = arith.truncf %52 : vector<64x128xf32> to vector<64x128xbf16>
    %cst_32 = arith.constant dense<0.000000e+00> : vector<64x128xf32>
    %54 = tpu.matmul %0, %53, %cst_32 {dimension_numbers = #tpu.dot_dimension_numbers<[1], [0], [0], [1], [0, 0, 1, 1], [], []>} : vector<64x64xbf16>, vector<64x128xbf16>, vector<64x128xf32> -> vector<64x128xf32>
    %55 = arith.truncf %54 : vector<64x128xf32> to vector<64x128xbf16>
    %c0_33 = arith.constant 0 : index
    %c0_34 = arith.constant 0 : index
    %56 = vector.load %arg10[%c0_33, %c0_34] : memref<128x128xbf16, #tpu.memory_space<vmem>>, vector<128x128xbf16>
    %cst_35 = arith.constant dense<0.000000e+00> : vector<64x128xf32>
    %57 = tpu.matmul %53, %56, %cst_35 {dimension_numbers = #tpu.dot_dimension_numbers<[1], [0], [0], [1], [0, 0, 1, 1], [], []>} : vector<64x128xbf16>, vector<128x128xbf16>, vector<64x128xf32> -> vector<64x128xf32>
    %c0_36 = arith.constant 0 : index
    %c0_37 = arith.constant 0 : index
    %58 = vector.load %arg11[%c0_36, %c0_37] : memref<128x128xbf16, #tpu.memory_space<vmem>>, vector<128x128xbf16>
    %cst_38 = arith.constant dense<0.000000e+00> : vector<64x128xf32>
    %59 = tpu.matmul %55, %58, %cst_38 {dimension_numbers = #tpu.dot_dimension_numbers<[1], [0], [0], [1], [0, 0, 1, 1], [], []>} : vector<64x128xbf16>, vector<128x128xbf16>, vector<64x128xf32> -> vector<64x128xf32>
    %60 = arith.addf %57, %59 : vector<64x128xf32>
    %c0_39 = arith.constant 0 : index
    %c0_40 = arith.constant 0 : index
    %61 = vector.load %arg12[%c0_39, %c0_40] : memref<1x128xf32, #tpu.memory_space<vmem>>, vector<1x128xf32>
    %62 = vector.broadcast %61 : vector<1x128xf32> to vector<64x128xf32>
    %63 = arith.addf %60, %62 : vector<64x128xf32>
    %c0_41 = arith.constant 0 : index
    %c0_42 = arith.constant 0 : index
    %64 = vector.load %arg13[%c0_41, %c0_42] : memref<64x128xf32, #tpu.memory_space<vmem>>, vector<64x128xf32>
    tpu.vector_store %arg13[%c0_41, %c0_42], %63 {strides = array<i32>} : memref<64x128xf32, #tpu.memory_space<vmem>>, vector<64x128xf32>,
    return
  }
}

</mosaic_0001>

<llo_original>
// kernel: tpu_custom_call.1
$region0: #{tpu_custom_call.1}
  #allocation0 [shape = 'u32[]', space=smem, size = 0x4, offset = 0x4, fixed_abs, tag = 'smem constant byte address 0x4 - core index']
  #allocation1 [shape = 'u32[144,128]{1,0:T(1,128)}', space=vmem, size = 0x12000, scoped, tag = 'internal scratch']
  %s0 = inlined_call_operand.hbm [shape: bf16[64,64], index: 0, kind: input, shape index: {}]
  %s1 = inlined_call_operand.hbm [shape: bf16[64,128], index: 1, kind: input, shape index: {}]
  %s2 = inlined_call_operand.hbm [shape: bf16[128,128], index: 2, kind: input, shape index: {}]
  %s3 = inlined_call_operand.hbm [shape: bf16[128,128], index: 3, kind: input, shape index: {}]
  %s4 = inlined_call_operand.vmem [shape: f32[1,128], index: 4, kind: input, shape index: {}]
  %s5 = inlined_call_operand.vmem [shape: f32[1,128], index: 5, kind: input, shape index: {}]
  %s6 = inlined_call_operand.vmem [shape: f32[1,128], index: 6, kind: input, shape index: {}]
  %s7 = inlined_call_operand.hbm [shape: bf16[128,128], index: 7, kind: input, shape index: {}]
  %s8 = inlined_call_operand.hbm [shape: bf16[128,128], index: 8, kind: input, shape index: {}]
  %s9 = inlined_call_operand.vmem [shape: f32[1,128], index: 9, kind: input, shape index: {}]
  %s10 = inlined_call_operand.hbm [shape: bf16[128,128], index: 10, kind: input, shape index: {}]
  %s11 = inlined_call_operand.hbm [shape: bf16[128,128], index: 11, kind: input, shape index: {}]
  %s12 = inlined_call_operand.vmem [shape: f32[1,128], index: 12, kind: input, shape index: {}]
  %s13 = inlined_call_operand.hbm [shape: f32[64,128], index: 13, kind: output, shape index: {}]
  %s14 = sld [smem:[#allocation0]]
  $region94: #{tpu_custom_call.1} parent=0
    _
  %s16 = ssub.s32 1, %s14
  %s17 = scalar_select 0, %s16, %s14
  $region1: #{tpu_custom_call.1} parent=0
    #allocation2 [shape = 'u8[16384]{0}', space=vmem, size = 0x4000, scoped, tag = 'input window, operand 0, single buffered']
    #allocation3 [shape = 's32[1]{0}', space=sflag, size = 0x4, scoped, tag = 'scoped memory for tpu_custom_call.1']
    #allocation4 [shape = 's32[1]{0}', space=sflag, size = 0x4, scoped, tag = 'scoped memory for tpu_custom_call.1']
    #allocation5 [shape = 'u8[16384]{0}', space=vmem, size = 0x4000, scoped, tag = 'input window, operand 1, single buffered']
    #allocation6 [shape = 's32[1]{0}', space=sflag, size = 0x4, scoped, tag = 'scoped memory for tpu_custom_call.1']
    #allocation7 [shape = 'u8[32768]{0}', space=vmem, size = 0x8000, scoped, tag = 'input window, operand 2, single buffered']
    #allocation8 [shape = 'u8[32768]{0}', space=vmem, size = 0x8000, scoped, tag = 'input window, operand 3, single buffered']
    #allocation9 [shape = 's32[1]{0}', space=sflag, size = 0x4, scoped, tag = 'scoped memory for tpu_custom_call.1']
    #allocation10 [shape = 'u8[32768]{0}', space=vmem, size = 0x8000, scoped, tag = 'input window, operand 7, single buffered']
    #allocation11 [shape = 'u8[32768]{0}', space=vmem, size = 0x8000, scoped, tag = 'input window, operand 8, single buffered']
    #allocation12 [shape = 's32[1]{0}', space=sflag, size = 0x4, scoped, tag = 'scoped memory for tpu_custom_call.1']
    #allocation13 [shape = 'u8[32768]{0}', space=vmem, size = 0x8000, scoped, tag = 'input window, operand 10, single buffered']
    #allocation14 [shape = 'u8[32768]{0}', space=vmem, size = 0x8000, scoped, tag = 'input window, operand 11, single buffered']
    #allocation15 [shape = 's32[1]{0}', space=sflag, size = 0x4, scoped, tag = 'scoped memory for tpu_custom_call.1']
    #allocation16 [shape = 'u8[32768]{0}', space=vmem, size = 0x8000, scoped, tag = 'output window, operand 0, single buffered']
    %18 = vsyncpa [#allocation3], 0
    %19 = vsyncpa [#allocation6], 0
    %20 = vsyncpa [#allocation9], 0
    %21 = vsyncpa [#allocation12], 0
    %22 = vsyncpa [#allocation15], 0
    %23 = vsyncpa [#allocation4], 0
    // Predicated region
    $region2: #{tpu_custom_call.1} parent=1 // pred_check
      _
    $region3: #{tpu_custom_call.1} parent=1 // pred_check_branch
      %25 = sbr.rel (0) target = $region5
    $region4: #{tpu_custom_call.1} parent=1 // pred_region
      %s27 = ssub.s32 512, 512
      %28 = vsyncadd [#allocation3], %s27
      %s29 = sshll.u32 [#allocation2], 4
      %s30 = int_to_ptr.vmem [resolvable:$true] %s29
      %35 = dma.hbm_to_vmem [thread:$0]  %s0, 512, %s30, [#allocation3], 64, 64, 4
    $region5: #{tpu_custom_call.1} parent=1 // pred_fallthru
      _
    // Predicated region
    $region6: #{tpu_custom_call.1} parent=1 // pred_check
      _
    $region7: #{tpu_custom_call.1} parent=1 // pred_check_branch
      %37 = sbr.rel (0) target = $region9
    $region8: #{tpu_custom_call.1} parent=1 // pred_region
      %s39 = ssub.s32 512, 512
      %40 = vsyncadd [#allocation6], %s39
      %s41 = sshll.u32 [#allocation5], 4
      %s42 = int_to_ptr.vmem [resolvable:$true] %s41
      %47 = dma.hbm_to_vmem [thread:$0]  %s1, 512, %s42, [#allocation6], 64, 64, 4
    $region9: #{tpu_custom_call.1} parent=1 // pred_fallthru
      _
    // Predicated region
    $region10: #{tpu_custom_call.1} parent=1 // pred_check
      _
    $region11: #{tpu_custom_call.1} parent=1 // pred_check_branch
      %49 = sbr.rel (0) target = $region13
    $region12: #{tpu_custom_call.1} parent=1 // pred_region
      %s51 = ssub.s32 1024, 1024
      %52 = vsyncadd [#allocation6], %s51
      %s53 = sshll.u32 [#allocation7], 4
      %s54 = int_to_ptr.vmem [resolvable:$true] %s53
      %59 = dma.hbm_to_vmem [thread:$0]  %s2, 1024, %s54, [#allocation6], 64, 64, 4
    $region13: #{tpu_custom_call.1} parent=1 // pred_fallthru
      _
    // Predicated region
    $region14: #{tpu_custom_call.1} parent=1 // pred_check
      _
    $region15: #{tpu_custom_call.1} parent=1 // pred_check_branch
      %61 = sbr.rel (0) target = $region17
    $region16: #{tpu_custom_call.1} parent=1 // pred_region
      %s63 = ssub.s32 1024, 1024
      %64 = vsyncadd [#allocation9], %s63
      %s65 = sshll.u32 [#allocation8], 4
      %s66 = int_to_ptr.vmem [resolvable:$true] %s65
      %71 = dma.hbm_to_vmem [thread:$0]  %s3, 1024, %s66, [#allocation9], 64, 64, 4
    $region17: #{tpu_custom_call.1} parent=1 // pred_fallthru
      _
    // Predicated region
    $region18: #{tpu_custom_call.1} parent=1 // pred_check
      _
    $region19: #{tpu_custom_call.1} parent=1 // pred_check_branch
      %73 = sbr.rel (0) target = $region21
    $region20: #{tpu_custom_call.1} parent=1 // pred_region
      _
    $region21: #{tpu_custom_call.1} parent=1 // pred_fallthru
      _
    // Predicated region
    $region22: #{tpu_custom_call.1} parent=1 // pred_check
      _
    $region23: #{tpu_custom_call.1} parent=1 // pred_check_branch
      %75 = sbr.rel (0) target = $region25
    $region24: #{tpu_custom_call.1} parent=1 // pred_region
      _
    $region25: #{tpu_custom_call.1} parent=1 // pred_fallthru
      _
    // Predicated region
    $region26: #{tpu_custom_call.1} parent=1 // pred_check
      _
    $region27: #{tpu_custom_call.1} parent=1 // pred_check_branch
      %77 = sbr.rel (0) target = $region29
    $region28: #{tpu_custom_call.1} parent=1 // pred_region
      _
    $region29: #{tpu_custom_call.1} parent=1 // pred_fallthru
      _
    // Predicated region
    $region30: #{tpu_custom_call.1} parent=1 // pred_check
      _
    $region31: #{tpu_custom_call.1} parent=1 // pred_check_branch
      %79 = sbr.rel (0) target = $region33
    $region32: #{tpu_custom_call.1} parent=1 // pred_region
      %s81 = ssub.s32 1024, 1024
      %82 = vsyncadd [#allocation9], %s81
      %s83 = sshll.u32 [#allocation10], 4
      %s84 = int_to_ptr.vmem [resolvable:$true] %s83
      %89 = dma.hbm_to_vmem [thread:$0]  %s7, 1024, %s84, [#allocation9], 64, 64, 4
    $region33: #{tpu_custom_call.1} parent=1 // pred_fallthru
      _
    // Predicated region
    $region34: #{tpu_custom_call.1} parent=1 // pred_check
      _
    $region35: #{tpu_custom_call.1} parent=1 // pred_check_branch
      %91 = sbr.rel (0) target = $region37
    $region36: #{tpu_custom_call.1} parent=1 // pred_region
      %s93 = ssub.s32 1024, 1024
      %94 = vsyncadd [#allocation12], %s93
      %s95 = sshll.u32 [#allocation11], 4
      %s96 = int_to_ptr.vmem [resolvable:$true] %s95
      %101 = dma.hbm_to_vmem [thread:$0]  %s8, 1024, %s96, [#allocation12], 64, 64, 4
    $region37: #{tpu_custom_call.1} parent=1 // pred_fallthru
      _
    // Predicated region
    $region38: #{tpu_custom_call.1} parent=1 // pred_check
      _
    $region39: #{tpu_custom_call.1} parent=1 // pred_check_branch
      %103 = sbr.rel (0) target = $region41
    $region40: #{tpu_custom_call.1} parent=1 // pred_region
      _
    $region41: #{tpu_custom_call.1} parent=1 // pred_fallthru
      _
    // Predicated region
    $region42: #{tpu_custom_call.1} parent=1 // pred_check
      _
    $region43: #{tpu_custom_call.1} parent=1 // pred_check_branch
      %105 = sbr.rel (0) target = $region45
    $region44: #{tpu_custom_call.1} parent=1 // pred_region
      %s107 = ssub.s32 1024, 1024
      %108 = vsyncadd [#allocation12], %s107
      %s109 = sshll.u32 [#allocation13], 4
      %s110 = int_to_ptr.vmem [resolvable:$true] %s109
      %115 = dma.hbm_to_vmem [thread:$0]  %s10, 1024, %s110, [#allocation12], 64, 64, 4
    $region45: #{tpu_custom_call.1} parent=1 // pred_fallthru
      _
    // Predicated region
    $region46: #{tpu_custom_call.1} parent=1 // pred_check
      _
    $region47: #{tpu_custom_call.1} parent=1 // pred_check_branch
      %117 = sbr.rel (0) target = $region49
    $region48: #{tpu_custom_call.1} parent=1 // pred_region
      %s119 = ssub.s32 1024, 1024
      %120 = vsyncadd [#allocation15], %s119
      %s121 = sshll.u32 [#allocation14], 4
      %s122 = int_to_ptr.vmem [resolvable:$true] %s121
      %127 = dma.hbm_to_vmem [thread:$0]  %s11, 1024, %s122, [#allocation15], 64, 64, 4
    $region49: #{tpu_custom_call.1} parent=1 // pred_fallthru
      _
    // Predicated region
    $region50: #{tpu_custom_call.1} parent=1 // pred_check
      _
    $region51: #{tpu_custom_call.1} parent=1 // pred_check_branch
      %129 = sbr.rel (0) target = $region53
    $region52: #{tpu_custom_call.1} parent=1 // pred_region
      _
    $region53: #{tpu_custom_call.1} parent=1 // pred_fallthru
      _
    // Predicated region
    $region54: #{tpu_custom_call.1} parent=1 // pred_check
      _
    $region55: #{tpu_custom_call.1} parent=1 // pred_check_branch
      %131 = sbr.rel (0) target = $region57
    $region56: #{tpu_custom_call.1} parent=1 // pred_region
      %132 = dma.done [#allocation3], 512
    $region57: #{tpu_custom_call.1} parent=1 // pred_fallthru
      _
    // Predicated region
    $region58: #{tpu_custom_call.1} parent=1 // pred_check
      _
    $region59: #{tpu_custom_call.1} parent=1 // pred_check_branch
      %134 = sbr.rel (0) target = $region61
    $region60: #{tpu_custom_call.1} parent=1 // pred_region
      %135 = dma.done [#allocation6], 512
    $region61: #{tpu_custom_call.1} parent=1 // pred_fallthru
      _
    // Predicated region
    $region62: #{tpu_custom_call.1} parent=1 // pred_check
      _
    $region63: #{tpu_custom_call.1} parent=1 // pred_check_branch
      %137 = sbr.rel (0) target = $region65
    $region64: #{tpu_custom_call.1} parent=1 // pred_region
      %138 = dma.done [#allocation6], 1024
    $region65: #{tpu_custom_call.1} parent=1 // pred_fallthru
      _
    // Predicated region
    $region66: #{tpu_custom_call.1} parent=1 // pred_check
      _
    $region67: #{tpu_custom_call.1} parent=1 // pred_check_branch
      %140 = sbr.rel (0) target = $region69
    $region68: #{tpu_custom_call.1} parent=1 // pred_region
      %141 = dma.done [#allocation9], 1024
    $region69: #{tpu_custom_call.1} parent=1 // pred_fallthru
      _
    // Predicated region
    $region70: #{tpu_custom_call.1} parent=1 // pred_check
      _
    $region71: #{tpu_custom_call.1} parent=1 // pred_check_branch
      %143 = sbr.rel (0) target = $region73
    $region72: #{tpu_custom_call.1} parent=1 // pred_region
      %144 = dma.done [#allocation9], 1024
    $region73: #{tpu_custom_call.1} parent=1 // pred_fallthru
      _
    // Predicated region
    $region74: #{tpu_custom_call.1} parent=1 // pred_check
      _
    $region75: #{tpu_custom_call.1} parent=1 // pred_check_branch
      %146 = sbr.rel (0) target = $region77
    $region76: #{tpu_custom_call.1} parent=1 // pred_region
      %147 = dma.done [#allocation12], 1024
    $region77: #{tpu_custom_call.1} parent=1 // pred_fallthru
      _
    // Predicated region
    $region78: #{tpu_custom_call.1} parent=1 // pred_check
      _
    $region79: #{tpu_custom_call.1} parent=1 // pred_check_branch
      %149 = sbr.rel (0) target = $region81
    $region80: #{tpu_custom_call.1} parent=1 // pred_region
      %150 = dma.done [#allocation12], 1024
    $region81: #{tpu_custom_call.1} parent=1 // pred_fallthru
      _
    // Predicated region
    $region82: #{tpu_custom_call.1} parent=1 // pred_check
      _
    $region83: #{tpu_custom_call.1} parent=1 // pred_check_branch
      %152 = sbr.rel (0) target = $region85
    $region84: #{tpu_custom_call.1} parent=1 // pred_region
      %153 = dma.done [#allocation15], 1024
    $region85: #{tpu_custom_call.1} parent=1 // pred_fallthru
      _
    %v155 = vld [vmem:[#allocation2] sm:$0xf]
    %v156 = vld [vmem:[#allocation2 + $0x4] sm:$0xf]
    %v157 = vld [vmem:[#allocation2 + $0x8] sm:$0xf]
    %v158 = vld [vmem:[#allocation2 + $0xc] sm:$0xf]
    %v159 = vld [vmem:[#allocation2 + $0x10] sm:$0xf]
    %v160 = vld [vmem:[#allocation2 + $0x14] sm:$0xf]
    %v161 = vld [vmem:[#allocation2 + $0x18] sm:$0xf]
    %v162 = vld [vmem:[#allocation2 + $0x1c] sm:$0xf]
    %v163 = vld [vmem:[#allocation5] sm:$0xf]
    %v164 = vld [vmem:[#allocation5 + $0x4] sm:$0xf]
    %v165 = vld [vmem:[#allocation5 + $0x8] sm:$0xf]
    %v166 = vld [vmem:[#allocation5 + $0xc] sm:$0xf]
    %v167 = vld [vmem:[#allocation5 + $0x10] sm:$0xf]
    %v168 = vld [vmem:[#allocation5 + $0x14] sm:$0xf]
    %v169 = vld [vmem:[#allocation5 + $0x18] sm:$0xf]
    %v170 = vld [vmem:[#allocation5 + $0x1c] sm:$0xf]
    %v179 = vunpack.c.l.b16 %v155
    %v180 = vunpack.c.l.b16 %v156
    %v181 = vunpack.c.l.b16 %v157
    %v182 = vunpack.c.l.b16 %v158
    %v183 = vunpack.c.l.b16 %v159
    %v184 = vunpack.c.l.b16 %v160
    %v185 = vunpack.c.l.b16 %v161
    %v186 = vunpack.c.l.b16 %v162
    %v187 = vpack.c.b16 %v180, %v179
    %v188 = vpack.c.b16 %v182, %v181
    %v189 = vpack.c.b16 %v184, %v183
    %v190 = vpack.c.b16 %v186, %v185
    %v199 = vunpack.c.l.b16 %v163
    %v200 = vunpack.c.l.b16 %v164
    %v201 = vunpack.c.l.b16 %v165
    %v202 = vunpack.c.l.b16 %v166
    %v203 = vunpack.c.l.b16 %v167
    %v204 = vunpack.c.l.b16 %v168
    %v205 = vunpack.c.l.b16 %v169
    %v206 = vunpack.c.l.b16 %v170
    %v207 = vpack.c.b16 %v200, %v199
    %v208 = vpack.c.b16 %v202, %v201
    %v209 = vpack.c.b16 %v204, %v203
    %v210 = vpack.c.b16 %v206, %v205
    %vm215 = vcmask 523264
    %v217 = vsel %vm215, %v187, 0
    %v220 = vsel %vm215, %v188, 0
    %v223 = vsel %vm215, %v189, 0
    %v226 = vsel %vm215, %v190, 0
    %228 = vmatprep.subr.bf16.mxu0 0
    %229 = vmatpush1.bf16.msra.mxu0 0
    %230 = vmatprep.subr.bf16.mxu0 0
    %231 = vmatpush1.bf16.msra.mxu0 0
    %232 = vmatprep.subr.bf16.mxu0 0
    %233 = vmatpush1.bf16.msra.mxu0 0
    %234 = vmatprep.subr.bf16.mxu0 0
    %235 = vmatpush1.bf16.msra.mxu0 0
    %236 = vmatprep.subr.bf16.mxu0 0
    %237 = vmatpush1.bf16.msra.mxu0 %v210
    %238 = vmatprep.subr.bf16.mxu0 0
    %239 = vmatpush1.bf16.msra.mxu0 %v209
    %240 = vmatprep.subr.bf16.mxu0 0
    %241 = vmatpush1.bf16.msra.mxu0 %v208
    %242 = vmatprep.subr.bf16.mxu0 0
    %243 = vmatpush1.bf16.msra.mxu0 %v207
    %244 = vmatprep.subr.bf16.mxu0 0
    %245 = vmatpush2.bf16.msra.mxu0 0
    %246 = vmatprep.subr.bf16.mxu0 0
    %247 = vmatpush2.bf16.msra.mxu0 0
    %248 = vmatprep.subr.bf16.mxu0 0
    %249 = vmatpush2.bf16.msra.mxu0 0
    %250 = vmatprep.subr.bf16.mxu0 0
    %251 = vmatpush2.bf16.msra.mxu0 0
    %252 = vmatprep.subr.bf16.mxu0 0
    %253 = vmatpush2.bf16.msra.mxu0 0
    %254 = vmatprep.subr.bf16.mxu0 0
    %255 = vmatpush2.bf16.msra.mxu0 0
    %256 = vmatprep.subr.bf16.mxu0 0
    %257 = vmatpush2.bf16.msra.mxu0 0
    %258 = vmatprep.subr.bf16.mxu0 0
    %259 = vmatpush2.bf16.msra.mxu0 0
    %260 = vmatprep.mubr.bf16.mxu0 0
    %261 = vmatmul.mubr.bf16.gmra.mxu0 %v217
    %v262 = vpop.f32.mrf.mxu0
    %v263 = vadd.f32 0.0, %v262
    %v264 = vpop.f32.mrf.mxu0
    %v265 = vpop.f32.mrf.mxu0
    %v266 = vadd.f32 0.0, %v265
    %v267 = vpop.f32.mrf.mxu0
    %268 = vmatprep.mubr.bf16.mxu0 0
    %269 = vmatmul.mubr.bf16.gmra.mxu0 %v220
    %v270 = vpop.f32.mrf.mxu0
    %v271 = vadd.f32 0.0, %v270
    %v272 = vpop.f32.mrf.mxu0
    %v273 = vpop.f32.mrf.mxu0
    %v274 = vadd.f32 0.0, %v273
    %v275 = vpop.f32.mrf.mxu0
    %276 = vmatprep.mubr.bf16.mxu0 0
    %277 = vmatmul.mubr.bf16.gmra.mxu0 %v223
    %v278 = vpop.f32.mrf.mxu0
    %v279 = vadd.f32 0.0, %v278
    %v280 = vpop.f32.mrf.mxu0
    %v281 = vpop.f32.mrf.mxu0
    %v282 = vadd.f32 0.0, %v281
    %v283 = vpop.f32.mrf.mxu0
    %284 = vmatprep.mubr.bf16.mxu0 0
    %285 = vmatmul.mubr.bf16.gmra.mxu0 %v226
    %v286 = vpop.f32.mrf.mxu0
    %v287 = vadd.f32 0.0, %v286
    %v288 = vpop.f32.mrf.mxu0
    %v289 = vpop.f32.mrf.mxu0
    %v290 = vadd.f32 0.0, %v289
    %v291 = vpop.f32.mrf.mxu0
    %292 = vdwg.mxu0
    %v293 = vpack.c.bf16 %v266, %v263
    %v294 = vpack.c.bf16 %v274, %v271
    %v295 = vpack.c.bf16 %v282, %v279
    %v296 = vpack.c.bf16 %v290, %v287
    %v297 = vld [vmem:[#allocation7] sm:$0xf]
    %v298 = vld [vmem:[#allocation7 + $0x4] sm:$0xf]
    %v299 = vld [vmem:[#allocation7 + $0x8] sm:$0xf]
    %v300 = vld [vmem:[#allocation7 + $0xc] sm:$0xf]
    %v301 = vld [vmem:[#allocation7 + $0x10] sm:$0xf]
    %v302 = vld [vmem:[#allocation7 + $0x14] sm:$0xf]
    %v303 = vld [vmem:[#allocation7 + $0x18] sm:$0xf]
    %v304 = vld [vmem:[#allocation7 + $0x1c] sm:$0xf]
    %v305 = vld [vmem:[#allocation7 + $0x20] sm:$0xf]
    %v306 = vld [vmem:[#allocation7 + $0x24] sm:$0xf]
    %v307 = vld [vmem:[#allocation7 + $0x28] sm:$0xf]
    %v308 = vld [vmem:[#allocation7 + $0x2c] sm:$0xf]
    %v309 = vld [vmem:[#allocation7 + $0x30] sm:$0xf]
    %v310 = vld [vmem:[#allocation7 + $0x34] sm:$0xf]
    %v311 = vld [vmem:[#allocation7 + $0x38] sm:$0xf]
    %v312 = vld [vmem:[#allocation7 + $0x3c] sm:$0xf]
    %v313 = vld [vmem:[#allocation8] sm:$0xf]
    %v314 = vld [vmem:[#allocation8 + $0x4] sm:$0xf]
    %v315 = vld [vmem:[#allocation8 + $0x8] sm:$0xf]
    %v316 = vld [vmem:[#allocation8 + $0xc] sm:$0xf]
    %v317 = vld [vmem:[#allocation8 + $0x10] sm:$0xf]
    %v318 = vld [vmem:[#allocation8 + $0x14] sm:$0xf]
    %v319 = vld [vmem:[#allocation8 + $0x18] sm:$0xf]
    %v320 = vld [vmem:[#allocation8 + $0x1c] sm:$0xf]
    %v321 = vld [vmem:[#allocation8 + $0x20] sm:$0xf]
    %v322 = vld [vmem:[#allocation8 + $0x24] sm:$0xf]
    %v323 = vld [vmem:[#allocation8 + $0x28] sm:$0xf]
    %v324 = vld [vmem:[#allocation8 + $0x2c] sm:$0xf]
    %v325 = vld [vmem:[#allocation8 + $0x30] sm:$0xf]
    %v326 = vld [vmem:[#allocation8 + $0x34] sm:$0xf]
    %v327 = vld [vmem:[#allocation8 + $0x38] sm:$0xf]
    %v328 = vld [vmem:[#allocation8 + $0x3c] sm:$0xf]
    %v345 = vunpack.c.l.b16 %v313
    %v346 = vunpack.c.l.b16 %v314
    %v347 = vunpack.c.l.b16 %v315
    %v348 = vunpack.c.l.b16 %v316
    %v349 = vunpack.c.l.b16 %v317
    %v350 = vunpack.c.l.b16 %v318
    %v351 = vunpack.c.l.b16 %v319
    %v352 = vunpack.c.l.b16 %v320
    %v353 = vunpack.c.l.b16 %v321
    %v354 = vunpack.c.l.b16 %v322
    %v355 = vunpack.c.l.b16 %v323
    %v356 = vunpack.c.l.b16 %v324
    %v357 = vunpack.c.l.b16 %v325
    %v358 = vunpack.c.l.b16 %v326
    %v359 = vunpack.c.l.b16 %v327
    %v360 = vunpack.c.l.b16 %v328
    %v361 = vpack.c.b16 %v346, %v345
    %v362 = vpack.c.b16 %v348, %v347
    %v363 = vpack.c.b16 %v350, %v349
    %v364 = vpack.c.b16 %v352, %v351
    %v365 = vpack.c.b16 %v354, %v353
    %v366 = vpack.c.b16 %v356, %v355
    %v367 = vpack.c.b16 %v358, %v357
    %v368 = vpack.c.b16 %v360, %v359
    %377 = vmatprep.subr.bf16.mxu0 0
    %378 = vmatpush1.bf16.msra.mxu0 %v368
    %379 = vmatprep.subr.bf16.mxu0 0
    %380 = vmatpush1.bf16.msra.mxu0 %v367
    %381 = vmatprep.subr.bf16.mxu0 0
    %382 = vmatpush1.bf16.msra.mxu0 %v366
    %383 = vmatprep.subr.bf16.mxu0 0
    %384 = vmatpush1.bf16.msra.mxu0 %v365
    %385 = vmatprep.subr.bf16.mxu0 0
    %386 = vmatpush1.bf16.msra.mxu0 %v364
    %387 = vmatprep.subr.bf16.mxu0 0
    %388 = vmatpush1.bf16.msra.mxu0 %v363
    %389 = vmatprep.subr.bf16.mxu0 0
    %390 = vmatpush1.bf16.msra.mxu0 %v362
    %391 = vmatprep.subr.bf16.mxu0 0
    %392 = vmatpush1.bf16.msra.mxu0 %v361
    %393 = vmatprep.subr.bf16.mxu0 0
    %394 = vmatpush2.bf16.msra.mxu0 0
    %395 = vmatprep.subr.bf16.mxu0 0
    %396 = vmatpush2.bf16.msra.mxu0 0
    %397 = vmatprep.subr.bf16.mxu0 0
    %398 = vmatpush2.bf16.msra.mxu0 0
    %399 = vmatprep.subr.bf16.mxu0 0
    %400 = vmatpush2.bf16.msra.mxu0 0
    %401 = vmatprep.subr.bf16.mxu0 0
    %402 = vmatpush2.bf16.msra.mxu0 0
    %403 = vmatprep.subr.bf16.mxu0 0
    %404 = vmatpush2.bf16.msra.mxu0 0
    %405 = vmatprep.subr.bf16.mxu0 0
    %406 = vmatpush2.bf16.msra.mxu0 0
    %407 = vmatprep.subr.bf16.mxu0 0
    %408 = vmatpush2.bf16.msra.mxu0 0
    %409 = vmatprep.mubr.bf16.mxu0 0
    %410 = vmatmul.mubr.bf16.gmra.mxu0 %v293
    %v411 = vpop.f32.mrf.mxu0
    %v412 = vadd.f32 0.0, %v411
    %v413 = vpop.f32.mrf.mxu0
    %v414 = vpop.f32.mrf.mxu0
    %v415 = vadd.f32 0.0, %v414
    %v416 = vpop.f32.mrf.mxu0
    %417 = vmatprep.mubr.bf16.mxu0 0
    %418 = vmatmul.mubr.bf16.gmra.mxu0 %v294
    %v419 = vpop.f32.mrf.mxu0
    %v420 = vadd.f32 0.0, %v419
    %v421 = vpop.f32.mrf.mxu0
    %v422 = vpop.f32.mrf.mxu0
    %v423 = vadd.f32 0.0, %v422
    %v424 = vpop.f32.mrf.mxu0
    %425 = vmatprep.mubr.bf16.mxu0 0
    %426 = vmatmul.mubr.bf16.gmra.mxu0 %v295
    %v427 = vpop.f32.mrf.mxu0
    %v428 = vadd.f32 0.0, %v427
    %v429 = vpop.f32.mrf.mxu0
    %v430 = vpop.f32.mrf.mxu0
    %v431 = vadd.f32 0.0, %v430
    %v432 = vpop.f32.mrf.mxu0
    %433 = vmatprep.mubr.bf16.mxu0 0
    %434 = vmatmul.mubr.bf16.gmra.mxu0 %v296
    %v435 = vpop.f32.mrf.mxu0
    %v436 = vadd.f32 0.0, %v435
    %v437 = vpop.f32.mrf.mxu0
    %v438 = vpop.f32.mrf.mxu0
    %v439 = vadd.f32 0.0, %v438
    %v440 = vpop.f32.mrf.mxu0
    %441 = vdwg.mxu0
    %v458 = vunpack.c.l.b16 %v297
    %v459 = vunpack.c.l.b16 %v298
    %v460 = vunpack.c.l.b16 %v299
    %v461 = vunpack.c.l.b16 %v300
    %v462 = vunpack.c.l.b16 %v301
    %v463 = vunpack.c.l.b16 %v302
    %v464 = vunpack.c.l.b16 %v303
    %v465 = vunpack.c.l.b16 %v304
    %v466 = vunpack.c.l.b16 %v305
    %v467 = vunpack.c.l.b16 %v306
    %v468 = vunpack.c.l.b16 %v307
    %v469 = vunpack.c.l.b16 %v308
    %v470 = vunpack.c.l.b16 %v309
    %v471 = vunpack.c.l.b16 %v310
    %v472 = vunpack.c.l.b16 %v311
    %v473 = vunpack.c.l.b16 %v312
    %v474 = vpack.c.b16 %v459, %v458
    %v475 = vpack.c.b16 %v461, %v460
    %v476 = vpack.c.b16 %v463, %v462
    %v477 = vpack.c.b16 %v465, %v464
    %v478 = vpack.c.b16 %v467, %v466
    %v479 = vpack.c.b16 %v469, %v468
    %v480 = vpack.c.b16 %v471, %v470
    %v481 = vpack.c.b16 %v473, %v472
    %490 = vmatprep.subr.bf16.mxu0 0
    %491 = vmatpush1.bf16.msra.mxu0 %v481
    %492 = vmatprep.subr.bf16.mxu0 0
    %493 = vmatpush1.bf16.msra.mxu0 %v480
    %494 = vmatprep.subr.bf16.mxu0 0
    %495 = vmatpush1.bf16.msra.mxu0 %v479
    %496 = vmatprep.subr.bf16.mxu0 0
    %497 = vmatpush1.bf16.msra.mxu0 %v478
    %498 = vmatprep.subr.bf16.mxu0 0
    %499 = vmatpush1.bf16.msra.mxu0 %v477
    %500 = vmatprep.subr.bf16.mxu0 0
    %501 = vmatpush1.bf16.msra.mxu0 %v476
    %502 = vmatprep.subr.bf16.mxu0 0
    %503 = vmatpush1.bf16.msra.mxu0 %v475
    %504 = vmatprep.subr.bf16.mxu0 0
    %505 = vmatpush1.bf16.msra.mxu0 %v474
    %506 = vmatprep.subr.bf16.mxu0 0
    %507 = vmatpush2.bf16.msra.mxu0 0
    %508 = vmatprep.subr.bf16.mxu0 0
    %509 = vmatpush2.bf16.msra.mxu0 0
    %510 = vmatprep.subr.bf16.mxu0 0
    %511 = vmatpush2.bf16.msra.mxu0 0
    %512 = vmatprep.subr.bf16.mxu0 0
    %513 = vmatpush2.bf16.msra.mxu0 0
    %514 = vmatprep.subr.bf16.mxu0 0
    %515 = vmatpush2.bf16.msra.mxu0 0
    %516 = vmatprep.subr.bf16.mxu0 0
    %517 = vmatpush2.bf16.msra.mxu0 0
    %518 = vmatprep.subr.bf16.mxu0 0
    %519 = vmatpush2.bf16.msra.mxu0 0
    %520 = vmatprep.subr.bf16.mxu0 0
    %521 = vmatpush2.bf16.msra.mxu0 0
    %522 = vmatprep.mubr.bf16.mxu0 0
    %523 = vmatmul.mubr.bf16.gmra.mxu0 %v207
    %v524 = vpop.f32.mrf.mxu0
    %v525 = vadd.f32 %v412, %v524
    %v526 = vpop.f32.mrf.mxu0
    %v527 = vpop.f32.mrf.mxu0
    %v528 = vadd.f32 %v415, %v527
    %v529 = vpop.f32.mrf.mxu0
    %530 = vmatprep.mubr.bf16.mxu0 0
    %531 = vmatmul.mubr.bf16.gmra.mxu0 %v208
    %v532 = vpop.f32.mrf.mxu0
    %v533 = vadd.f32 %v420, %v532
    %v534 = vpop.f32.mrf.mxu0
    %v535 = vpop.f32.mrf.mxu0
    %v536 = vadd.f32 %v423, %v535
    %v537 = vpop.f32.mrf.mxu0
    %538 = vmatprep.mubr.bf16.mxu0 0
    %539 = vmatmul.mubr.bf16.gmra.mxu0 %v209
    %v540 = vpop.f32.mrf.mxu0
    %v541 = vadd.f32 %v428, %v540
    %v542 = vpop.f32.mrf.mxu0
    %v543 = vpop.f32.mrf.mxu0
    %v544 = vadd.f32 %v431, %v543
    %v545 = vpop.f32.mrf.mxu0
    %546 = vmatprep.mubr.bf16.mxu0 0
    %547 = vmatmul.mubr.bf16.gmra.mxu0 %v210
    %v548 = vpop.f32.mrf.mxu0
    %v549 = vadd.f32 %v436, %v548
    %v550 = vpop.f32.mrf.mxu0
    %v551 = vpop.f32.mrf.mxu0
    %v552 = vadd.f32 %v439, %v551
    %v553 = vpop.f32.mrf.mxu0
    %554 = vdwg.mxu0
    %v555 = vld [vmem:[%s4] sm:$0x1]
    %v557 = vlaneseq
    %v558 = vshrl.u32 %v557, 7
    %v559 = vsub.s32 0, %v558
    %v560 = vrot.slane %v555, %v559
    %v562 = vadd.f32 %v525, %v560
    %v563 = vadd.f32 %v528, %v560
    %v564 = vadd.f32 %v533, %v560
    %v565 = vadd.f32 %v536, %v560
    %v566 = vadd.f32 %v541, %v560
    %v567 = vadd.f32 %v544, %v560
    %v568 = vadd.f32 %v549, %v560
    %v569 = vadd.f32 %v552, %v560
    %v570 = vmax.f32 %v562, 0.0
    %v571 = vmax.f32 %v563, 0.0
    %v572 = vmax.f32 %v564, 0.0
    %v573 = vmax.f32 %v565, 0.0
    %v574 = vmax.f32 %v566, 0.0
    %v575 = vmax.f32 %v567, 0.0
    %v576 = vmax.f32 %v568, 0.0
    %v577 = vmax.f32 %v569, 0.0
    %v578 = vadd.f32 %v570, %v571
    %v579 = vadd.f32 %v578, %v572
    %v580 = vadd.f32 %v579, %v573
    %v581 = vadd.f32 %v580, %v574
    %v582 = vadd.f32 %v581, %v575
    %v583 = vadd.f32 %v582, %v576
    %v584 = vadd.f32 %v583, %v577
    %v585 = vrot.slane %v584, 4
    %v586 = vadd.f32 %v584, %v585
    %v587 = vrot.slane %v586, 2
    %v588 = vadd.f32 %v586, %v587
    %v589 = vrot.slane %v588, 1
    %v590 = vadd.f32 %v588, %v589
    %v591 = vmul.f32 %v590, 0.015625
    %v592 = vmul.f32 %v570, %v570
    %v593 = vmul.f32 %v571, %v571
    %v594 = vmul.f32 %v572, %v572
    %v595 = vmul.f32 %v573, %v573
    %v596 = vmul.f32 %v574, %v574
    %v597 = vmul.f32 %v575, %v575
    %v598 = vmul.f32 %v576, %v576
    %v599 = vmul.f32 %v577, %v577
    %v600 = vadd.f32 %v592, %v593
    %v601 = vadd.f32 %v600, %v594
    %v602 = vadd.f32 %v601, %v595
    %v603 = vadd.f32 %v602, %v596
    %v604 = vadd.f32 %v603, %v597
    %v605 = vadd.f32 %v604, %v598
    %v606 = vadd.f32 %v605, %v599
    %v607 = vrot.slane %v606, 4
    %v608 = vadd.f32 %v606, %v607
    %v609 = vrot.slane %v608, 2
    %v610 = vadd.f32 %v608, %v609
    %v611 = vrot.slane %v610, 1
    %v612 = vadd.f32 %v610, %v611
    %v613 = vmul.f32 %v612, 0.015625
    %v614 = vmul.f32 %v591, %v591
    %v615 = vsub.f32 %v613, %v614
    %v616 = vmax.f32 %v615, 0.0
    %v617 = vsub.f32 %v570, %v591
    %v618 = vsub.f32 %v571, %v591
    %v619 = vsub.f32 %v572, %v591
    %v620 = vsub.f32 %v573, %v591
    %v621 = vsub.f32 %v574, %v591
    %v622 = vsub.f32 %v575, %v591
    %v623 = vsub.f32 %v576, %v591
    %v624 = vsub.f32 %v577, %v591
    %v625 = vadd.f32 %v616, 1e-05
    %v626 = vrsqrt.pop %v625
    %v627 = vmul.f32 %v617, %v626
    %v628 = vmul.f32 %v618, %v626
    %v629 = vmul.f32 %v619, %v626
    %v630 = vmul.f32 %v620, %v626
    %v631 = vmul.f32 %v621, %v626
    %v632 = vmul.f32 %v622, %v626
    %v633 = vmul.f32 %v623, %v626
    %v634 = vmul.f32 %v624, %v626
    %v635 = vld [vmem:[%s5] sm:$0x1]
    %v637 = vlaneseq
    %v638 = vshrl.u32 %v637, 7
    %v639 = vsub.s32 0, %v638
    %v640 = vrot.slane %v635, %v639
    %v642 = vmul.f32 %v627, %v640
    %v643 = vmul.f32 %v628, %v640
    %v644 = vmul.f32 %v629, %v640
    %v645 = vmul.f32 %v630, %v640
    %v646 = vmul.f32 %v631, %v640
    %v647 = vmul.f32 %v632, %v640
    %v648 = vmul.f32 %v633, %v640
    %v649 = vmul.f32 %v634, %v640
    %v650 = vld [vmem:[%s6] sm:$0x1]
    %v652 = vlaneseq
    %v653 = vshrl.u32 %v652, 7
    %v654 = vsub.s32 0, %v653
    %v655 = vrot.slane %v650, %v654
    %v657 = vadd.f32 %v642, %v655
    %v658 = vadd.f32 %v643, %v655
    %v659 = vadd.f32 %v644, %v655
    %v660 = vadd.f32 %v645, %v655
    %v661 = vadd.f32 %v646, %v655
    %v662 = vadd.f32 %v647, %v655
    %v663 = vadd.f32 %v648, %v655
    %v664 = vadd.f32 %v649, %v655
    %v665 = vpack.c.bf16 %v658, %v657
    %v666 = vpack.c.bf16 %v660, %v659
    %v667 = vpack.c.bf16 %v662, %v661
    %v668 = vpack.c.bf16 %v664, %v663
    %669 = vmatprep.subr.bf16.mxu0 0
    %670 = vmatpush1.bf16.msra.mxu0 0
    %671 = vmatprep.subr.bf16.mxu0 0
    %672 = vmatpush1.bf16.msra.mxu0 0
    %673 = vmatprep.subr.bf16.mxu0 0
    %674 = vmatpush1.bf16.msra.mxu0 0
    %675 = vmatprep.subr.bf16.mxu0 0
    %676 = vmatpush1.bf16.msra.mxu0 0
    %677 = vmatprep.subr.bf16.mxu0 0
    %678 = vmatpush1.bf16.msra.mxu0 %v668
    %679 = vmatprep.subr.bf16.mxu0 0
    %680 = vmatpush1.bf16.msra.mxu0 %v667
    %681 = vmatprep.subr.bf16.mxu0 0
    %682 = vmatpush1.bf16.msra.mxu0 %v666
    %683 = vmatprep.subr.bf16.mxu0 0
    %684 = vmatpush1.bf16.msra.mxu0 %v665
    %685 = vmatprep.subr.bf16.mxu0 0
    %686 = vmatpush2.bf16.msra.mxu0 0
    %687 = vmatprep.subr.bf16.mxu0 0
    %688 = vmatpush2.bf16.msra.mxu0 0
    %689 = vmatprep.subr.bf16.mxu0 0
    %690 = vmatpush2.bf16.msra.mxu0 0
    %691 = vmatprep.subr.bf16.mxu0 0
    %692 = vmatpush2.bf16.msra.mxu0 0
    %693 = vmatprep.subr.bf16.mxu0 0
    %694 = vmatpush2.bf16.msra.mxu0 0
    %695 = vmatprep.subr.bf16.mxu0 0
    %696 = vmatpush2.bf16.msra.mxu0 0
    %697 = vmatprep.subr.bf16.mxu0 0
    %698 = vmatpush2.bf16.msra.mxu0 0
    %699 = vmatprep.subr.bf16.mxu0 0
    %700 = vmatpush2.bf16.msra.mxu0 0
    %701 = vmatprep.mubr.bf16.mxu0 0
    %702 = vmatmul.mubr.bf16.gmra.mxu0 %v217
    %v703 = vpop.f32.mrf.mxu0
    %v704 = vadd.f32 0.0, %v703
    %v705 = vpop.f32.mrf.mxu0
    %v706 = vpop.f32.mrf.mxu0
    %v707 = vadd.f32 0.0, %v706
    %v708 = vpop.f32.mrf.mxu0
    %709 = vmatprep.mubr.bf16.mxu0 0
    %710 = vmatmul.mubr.bf16.gmra.mxu0 %v220
    %v711 = vpop.f32.mrf.mxu0
    %v712 = vadd.f32 0.0, %v711
    %v713 = vpop.f32.mrf.mxu0
    %v714 = vpop.f32.mrf.mxu0
    %v715 = vadd.f32 0.0, %v714
    %v716 = vpop.f32.mrf.mxu0
    %717 = vmatprep.mubr.bf16.mxu0 0
    %718 = vmatmul.mubr.bf16.gmra.mxu0 %v223
    %v719 = vpop.f32.mrf.mxu0
    %v720 = vadd.f32 0.0, %v719
    %v721 = vpop.f32.mrf.mxu0
    %v722 = vpop.f32.mrf.mxu0
    %v723 = vadd.f32 0.0, %v722
    %v724 = vpop.f32.mrf.mxu0
    %725 = vmatprep.mubr.bf16.mxu0 0
    %726 = vmatmul.mubr.bf16.gmra.mxu0 %v226
    %v727 = vpop.f32.mrf.mxu0
    %v728 = vadd.f32 0.0, %v727
    %v729 = vpop.f32.mrf.mxu0
    %v730 = vpop.f32.mrf.mxu0
    %v731 = vadd.f32 0.0, %v730
    %v732 = vpop.f32.mrf.mxu0
    %733 = vdwg.mxu0
    %v734 = vpack.c.bf16 %v707, %v704
    %v735 = vpack.c.bf16 %v715, %v712
    %v736 = vpack.c.bf16 %v723, %v720
    %v737 = vpack.c.bf16 %v731, %v728
    %v738 = vld [vmem:[#allocation10] sm:$0xf]
    %v739 = vld [vmem:[#allocation10 + $0x4] sm:$0xf]
    %v740 = vld [vmem:[#allocation10 + $0x8] sm:$0xf]
    %v741 = vld [vmem:[#allocation10 + $0xc] sm:$0xf]
    %v742 = vld [vmem:[#allocation10 + $0x10] sm:$0xf]
    %v743 = vld [vmem:[#allocation10 + $0x14] sm:$0xf]
    %v744 = vld [vmem:[#allocation10 + $0x18] sm:$0xf]
    %v745 = vld [vmem:[#allocation10 + $0x1c] sm:$0xf]
    %v746 = vld [vmem:[#allocation10 + $0x20] sm:$0xf]
    %v747 = vld [vmem:[#allocation10 + $0x24] sm:$0xf]
    %v748 = vld [vmem:[#allocation10 + $0x28] sm:$0xf]
    %v749 = vld [vmem:[#allocation10 + $0x2c] sm:$0xf]
    %v750 = vld [vmem:[#allocation10 + $0x30] sm:$0xf]
    %v751 = vld [vmem:[#allocation10 + $0x34] sm:$0xf]
    %v752 = vld [vmem:[#allocation10 + $0x38] sm:$0xf]
    %v753 = vld [vmem:[#allocation10 + $0x3c] sm:$0xf]
    %v754 = vld [vmem:[#allocation11] sm:$0xf]
    %v755 = vld [vmem:[#allocation11 + $0x4] sm:$0xf]
    %v756 = vld [vmem:[#allocation11 + $0x8] sm:$0xf]
    %v757 = vld [vmem:[#allocation11 + $0xc] sm:$0xf]
    %v758 = vld [vmem:[#allocation11 + $0x10] sm:$0xf]
    %v759 = vld [vmem:[#allocation11 + $0x14] sm:$0xf]
    %v760 = vld [vmem:[#allocation11 + $0x18] sm:$0xf]
    %v761 = vld [vmem:[#allocation11 + $0x1c] sm:$0xf]
    %v762 = vld [vmem:[#allocation11 + $0x20] sm:$0xf]
    %v763 = vld [vmem:[#allocation11 + $0x24] sm:$0xf]
    %v764 = vld [vmem:[#allocation11 + $0x28] sm:$0xf]
    %v765 = vld [vmem:[#allocation11 + $0x2c] sm:$0xf]
    %v766 = vld [vmem:[#allocation11 + $0x30] sm:$0xf]
    %v767 = vld [vmem:[#allocation11 + $0x34] sm:$0xf]
    %v768 = vld [vmem:[#allocation11 + $0x38] sm:$0xf]
    %v769 = vld [vmem:[#allocation11 + $0x3c] sm:$0xf]
    %v786 = vunpack.c.l.b16 %v754
    %v787 = vunpack.c.l.b16 %v755
    %v788 = vunpack.c.l.b16 %v756
    %v789 = vunpack.c.l.b16 %v757
    %v790 = vunpack.c.l.b16 %v758
    %v791 = vunpack.c.l.b16 %v759
    %v792 = vunpack.c.l.b16 %v760
    %v793 = vunpack.c.l.b16 %v761
    %v794 = vunpack.c.l.b16 %v762
    %v795 = vunpack.c.l.b16 %v763
    %v796 = vunpack.c.l.b16 %v764
    %v797 = vunpack.c.l.b16 %v765
    %v798 = vunpack.c.l.b16 %v766
    %v799 = vunpack.c.l.b16 %v767
    %v800 = vunpack.c.l.b16 %v768
    %v801 = vunpack.c.l.b16 %v769
    %v802 = vpack.c.b16 %v787, %v786
    %v803 = vpack.c.b16 %v789, %v788
    %v804 = vpack.c.b16 %v791, %v790
    %v805 = vpack.c.b16 %v793, %v792
    %v806 = vpack.c.b16 %v795, %v794
    %v807 = vpack.c.b16 %v797, %v796
    %v808 = vpack.c.b16 %v799, %v798
    %v809 = vpack.c.b16 %v801, %v800
    %818 = vmatprep.subr.bf16.mxu0 0
    %819 = vmatpush1.bf16.msra.mxu0 %v809
    %820 = vmatprep.subr.bf16.mxu0 0
    %821 = vmatpush1.bf16.msra.mxu0 %v808
    %822 = vmatprep.subr.bf16.mxu0 0
    %823 = vmatpush1.bf16.msra.mxu0 %v807
    %824 = vmatprep.subr.bf16.mxu0 0
    %825 = vmatpush1.bf16.msra.mxu0 %v806
    %826 = vmatprep.subr.bf16.mxu0 0
    %827 = vmatpush1.bf16.msra.mxu0 %v805
    %828 = vmatprep.subr.bf16.mxu0 0
    %829 = vmatpush1.bf16.msra.mxu0 %v804
    %830 = vmatprep.subr.bf16.mxu0 0
    %831 = vmatpush1.bf16.msra.mxu0 %v803
    %832 = vmatprep.subr.bf16.mxu0 0
    %833 = vmatpush1.bf16.msra.mxu0 %v802
    %834 = vmatprep.subr.bf16.mxu0 0
    %835 = vmatpush2.bf16.msra.mxu0 0
    %836 = vmatprep.subr.bf16.mxu0 0
    %837 = vmatpush2.bf16.msra.mxu0 0
    %838 = vmatprep.subr.bf16.mxu0 0
    %839 = vmatpush2.bf16.msra.mxu0 0
    %840 = vmatprep.subr.bf16.mxu0 0
    %841 = vmatpush2.bf16.msra.mxu0 0
    %842 = vmatprep.subr.bf16.mxu0 0
    %843 = vmatpush2.bf16.msra.mxu0 0
    %844 = vmatprep.subr.bf16.mxu0 0
    %845 = vmatpush2.bf16.msra.mxu0 0
    %846 = vmatprep.subr.bf16.mxu0 0
    %847 = vmatpush2.bf16.msra.mxu0 0
    %848 = vmatprep.subr.bf16.mxu0 0
    %849 = vmatpush2.bf16.msra.mxu0 0
    %850 = vmatprep.mubr.bf16.mxu0 0
    %851 = vmatmul.mubr.bf16.gmra.mxu0 %v734
    %v852 = vpop.f32.mrf.mxu0
    %v853 = vadd.f32 0.0, %v852
    %v854 = vpop.f32.mrf.mxu0
    %v855 = vpop.f32.mrf.mxu0
    %v856 = vadd.f32 0.0, %v855
    %v857 = vpop.f32.mrf.mxu0
    %858 = vmatprep.mubr.bf16.mxu0 0
    %859 = vmatmul.mubr.bf16.gmra.mxu0 %v735
    %v860 = vpop.f32.mrf.mxu0
    %v861 = vadd.f32 0.0, %v860
    %v862 = vpop.f32.mrf.mxu0
    %v863 = vpop.f32.mrf.mxu0
    %v864 = vadd.f32 0.0, %v863
    %v865 = vpop.f32.mrf.mxu0
    %866 = vmatprep.mubr.bf16.mxu0 0
    %867 = vmatmul.mubr.bf16.gmra.mxu0 %v736
    %v868 = vpop.f32.mrf.mxu0
    %v869 = vadd.f32 0.0, %v868
    %v870 = vpop.f32.mrf.mxu0
    %v871 = vpop.f32.mrf.mxu0
    %v872 = vadd.f32 0.0, %v871
    %v873 = vpop.f32.mrf.mxu0
    %874 = vmatprep.mubr.bf16.mxu0 0
    %875 = vmatmul.mubr.bf16.gmra.mxu0 %v737
    %v876 = vpop.f32.mrf.mxu0
    %v877 = vadd.f32 0.0, %v876
    %v878 = vpop.f32.mrf.mxu0
    %v879 = vpop.f32.mrf.mxu0
    %v880 = vadd.f32 0.0, %v879
    %v881 = vpop.f32.mrf.mxu0
    %882 = vdwg.mxu0
    %v899 = vunpack.c.l.b16 %v738
    %v900 = vunpack.c.l.b16 %v739
    %v901 = vunpack.c.l.b16 %v740
    %v902 = vunpack.c.l.b16 %v741
    %v903 = vunpack.c.l.b16 %v742
    %v904 = vunpack.c.l.b16 %v743
    %v905 = vunpack.c.l.b16 %v744
    %v906 = vunpack.c.l.b16 %v745
    %v907 = vunpack.c.l.b16 %v746
    %v908 = vunpack.c.l.b16 %v747
    %v909 = vunpack.c.l.b16 %v748
    %v910 = vunpack.c.l.b16 %v749
    %v911 = vunpack.c.l.b16 %v750
    %v912 = vunpack.c.l.b16 %v751
    %v913 = vunpack.c.l.b16 %v752
    %v914 = vunpack.c.l.b16 %v753
    %v915 = vpack.c.b16 %v900, %v899
    %v916 = vpack.c.b16 %v902, %v901
    %v917 = vpack.c.b16 %v904, %v903
    %v918 = vpack.c.b16 %v906, %v905
    %v919 = vpack.c.b16 %v908, %v907
    %v920 = vpack.c.b16 %v910, %v909
    %v921 = vpack.c.b16 %v912, %v911
    %v922 = vpack.c.b16 %v914, %v913
    %931 = vmatprep.subr.bf16.mxu0 0
    %932 = vmatpush1.bf16.msra.mxu0 %v922
    %933 = vmatprep.subr.bf16.mxu0 0
    %934 = vmatpush1.bf16.msra.mxu0 %v921
    %935 = vmatprep.subr.bf16.mxu0 0
    %936 = vmatpush1.bf16.msra.mxu0 %v920
    %937 = vmatprep.subr.bf16.mxu0 0
    %938 = vmatpush1.bf16.msra.mxu0 %v919
    %939 = vmatprep.subr.bf16.mxu0 0
    %940 = vmatpush1.bf16.msra.mxu0 %v918
    %941 = vmatprep.subr.bf16.mxu0 0
    %942 = vmatpush1.bf16.msra.mxu0 %v917
    %943 = vmatprep.subr.bf16.mxu0 0
    %944 = vmatpush1.bf16.msra.mxu0 %v916
    %945 = vmatprep.subr.bf16.mxu0 0
    %946 = vmatpush1.bf16.msra.mxu0 %v915
    %947 = vmatprep.subr.bf16.mxu0 0
    %948 = vmatpush2.bf16.msra.mxu0 0
    %949 = vmatprep.subr.bf16.mxu0 0
    %950 = vmatpush2.bf16.msra.mxu0 0
    %951 = vmatprep.subr.bf16.mxu0 0
    %952 = vmatpush2.bf16.msra.mxu0 0
    %953 = vmatprep.subr.bf16.mxu0 0
    %954 = vmatpush2.bf16.msra.mxu0 0
    %955 = vmatprep.subr.bf16.mxu0 0
    %956 = vmatpush2.bf16.msra.mxu0 0
    %957 = vmatprep.subr.bf16.mxu0 0
    %958 = vmatpush2.bf16.msra.mxu0 0
    %959 = vmatprep.subr.bf16.mxu0 0
    %960 = vmatpush2.bf16.msra.mxu0 0
    %961 = vmatprep.subr.bf16.mxu0 0
    %962 = vmatpush2.bf16.msra.mxu0 0
    %963 = vmatprep.mubr.bf16.mxu0 0
    %964 = vmatmul.mubr.bf16.gmra.mxu0 %v665
    %v965 = vpop.f32.mrf.mxu0
    %v966 = vadd.f32 %v853, %v965
    %v967 = vpop.f32.mrf.mxu0
    %v968 = vpop.f32.mrf.mxu0
    %v969 = vadd.f32 %v856, %v968
    %v970 = vpop.f32.mrf.mxu0
    %971 = vmatprep.mubr.bf16.mxu0 0
    %972 = vmatmul.mubr.bf16.gmra.mxu0 %v666
    %v973 = vpop.f32.mrf.mxu0
    %v974 = vadd.f32 %v861, %v973
    %v975 = vpop.f32.mrf.mxu0
    %v976 = vpop.f32.mrf.mxu0
    %v977 = vadd.f32 %v864, %v976
    %v978 = vpop.f32.mrf.mxu0
    %979 = vmatprep.mubr.bf16.mxu0 0
    %980 = vmatmul.mubr.bf16.gmra.mxu0 %v667
    %v981 = vpop.f32.mrf.mxu0
    %v982 = vadd.f32 %v869, %v981
    %v983 = vpop.f32.mrf.mxu0
    %v984 = vpop.f32.mrf.mxu0
    %v985 = vadd.f32 %v872, %v984
    %v986 = vpop.f32.mrf.mxu0
    %987 = vmatprep.mubr.bf16.mxu0 0
    %988 = vmatmul.mubr.bf16.gmra.mxu0 %v668
    %v989 = vpop.f32.mrf.mxu0
    %v990 = vadd.f32 %v877, %v989
    %v991 = vpop.f32.mrf.mxu0
    %v992 = vpop.f32.mrf.mxu0
    %v993 = vadd.f32 %v880, %v992
    %v994 = vpop.f32.mrf.mxu0
    %995 = vdwg.mxu0
    %v996 = vld [vmem:[%s9] sm:$0x1]
    %v998 = vlaneseq
    %v999 = vshrl.u32 %v998, 7
    %v1000 = vsub.s32 0, %v999
    %v1001 = vrot.slane %v996, %v1000
    %v1003 = vadd.f32 %v966, %v1001
    %v1004 = vadd.f32 %v969, %v1001
    %v1005 = vadd.f32 %v974, %v1001
    %v1006 = vadd.f32 %v977, %v1001
    %v1007 = vadd.f32 %v982, %v1001
    %v1008 = vadd.f32 %v985, %v1001
    %v1009 = vadd.f32 %v990, %v1001
    %v1010 = vadd.f32 %v993, %v1001
    %v1011 = vmax.f32 %v1003, 0.0
    %v1012 = vmax.f32 %v1004, 0.0
    %v1013 = vmax.f32 %v1005, 0.0
    %v1014 = vmax.f32 %v1006, 0.0
    %v1015 = vmax.f32 %v1007, 0.0
    %v1016 = vmax.f32 %v1008, 0.0
    %v1017 = vmax.f32 %v1009, 0.0
    %v1018 = vmax.f32 %v1010, 0.0
    %v1019 = vpack.c.bf16 %v1012, %v1011
    %v1020 = vpack.c.bf16 %v1014, %v1013
    %v1021 = vpack.c.bf16 %v1016, %v1015
    %v1022 = vpack.c.bf16 %v1018, %v1017
    %1023 = vmatprep.subr.bf16.mxu0 0
    %1024 = vmatpush1.bf16.msra.mxu0 0
    %1025 = vmatprep.subr.bf16.mxu0 0
    %1026 = vmatpush1.bf16.msra.mxu0 0
    %1027 = vmatprep.subr.bf16.mxu0 0
    %1028 = vmatpush1.bf16.msra.mxu0 0
    %1029 = vmatprep.subr.bf16.mxu0 0
    %1030 = vmatpush1.bf16.msra.mxu0 0
    %1031 = vmatprep.subr.bf16.mxu0 0
    %1032 = vmatpush1.bf16.msra.mxu0 %v1022
    %1033 = vmatprep.subr.bf16.mxu0 0
    %1034 = vmatpush1.bf16.msra.mxu0 %v1021
    %1035 = vmatprep.subr.bf16.mxu0 0
    %1036 = vmatpush1.bf16.msra.mxu0 %v1020
    %1037 = vmatprep.subr.bf16.mxu0 0
    %1038 = vmatpush1.bf16.msra.mxu0 %v1019
    %1039 = vmatprep.subr.bf16.mxu0 0
    %1040 = vmatpush2.bf16.msra.mxu0 0
    %1041 = vmatprep.subr.bf16.mxu0 0
    %1042 = vmatpush2.bf16.msra.mxu0 0
    %1043 = vmatprep.subr.bf16.mxu0 0
    %1044 = vmatpush2.bf16.msra.mxu0 0
    %1045 = vmatprep.subr.bf16.mxu0 0
    %1046 = vmatpush2.bf16.msra.mxu0 0
    %1047 = vmatprep.subr.bf16.mxu0 0
    %1048 = vmatpush2.bf16.msra.mxu0 0
    %1049 = vmatprep.subr.bf16.mxu0 0
    %1050 = vmatpush2.bf16.msra.mxu0 0
    %1051 = vmatprep.subr.bf16.mxu0 0
    %1052 = vmatpush2.bf16.msra.mxu0 0
    %1053 = vmatprep.subr.bf16.mxu0 0
    %1054 = vmatpush2.bf16.msra.mxu0 0
    %1055 = vmatprep.mubr.bf16.mxu0 0
    %1056 = vmatmul.mubr.bf16.gmra.mxu0 %v217
    %v1057 = vpop.f32.mrf.mxu0
    %v1058 = vadd.f32 0.0, %v1057
    %v1059 = vpop.f32.mrf.mxu0
    %v1060 = vpop.f32.mrf.mxu0
    %v1061 = vadd.f32 0.0, %v1060
    %v1062 = vpop.f32.mrf.mxu0
    %1063 = vmatprep.mubr.bf16.mxu0 0
    %1064 = vmatmul.mubr.bf16.gmra.mxu0 %v220
    %v1065 = vpop.f32.mrf.mxu0
    %v1066 = vadd.f32 0.0, %v1065
    %v1067 = vpop.f32.mrf.mxu0
    %v1068 = vpop.f32.mrf.mxu0
    %v1069 = vadd.f32 0.0, %v1068
    %v1070 = vpop.f32.mrf.mxu0
    %1071 = vmatprep.mubr.bf16.mxu0 0
    %1072 = vmatmul.mubr.bf16.gmra.mxu0 %v223
    %v1073 = vpop.f32.mrf.mxu0
    %v1074 = vadd.f32 0.0, %v1073
    %v1075 = vpop.f32.mrf.mxu0
    %v1076 = vpop.f32.mrf.mxu0
    %v1077 = vadd.f32 0.0, %v1076
    %v1078 = vpop.f32.mrf.mxu0
    %1079 = vmatprep.mubr.bf16.mxu0 0
    %1080 = vmatmul.mubr.bf16.gmra.mxu0 %v226
    %v1081 = vpop.f32.mrf.mxu0
    %v1082 = vadd.f32 0.0, %v1081
    %v1083 = vpop.f32.mrf.mxu0
    %v1084 = vpop.f32.mrf.mxu0
    %v1085 = vadd.f32 0.0, %v1084
    %v1086 = vpop.f32.mrf.mxu0
    %1087 = vdwg.mxu0
    %v1088 = vpack.c.bf16 %v1061, %v1058
    %v1089 = vpack.c.bf16 %v1069, %v1066
    %v1090 = vpack.c.bf16 %v1077, %v1074
    %v1091 = vpack.c.bf16 %v1085, %v1082
    %v1092 = vld [vmem:[#allocation13] sm:$0xf]
    %v1093 = vld [vmem:[#allocation13 + $0x4] sm:$0xf]
    %v1094 = vld [vmem:[#allocation13 + $0x8] sm:$0xf]
    %v1095 = vld [vmem:[#allocation13 + $0xc] sm:$0xf]
    %v1096 = vld [vmem:[#allocation13 + $0x10] sm:$0xf]
    %v1097 = vld [vmem:[#allocation13 + $0x14] sm:$0xf]
    %v1098 = vld [vmem:[#allocation13 + $0x18] sm:$0xf]
    %v1099 = vld [vmem:[#allocation13 + $0x1c] sm:$0xf]
    %v1100 = vld [vmem:[#allocation13 + $0x20] sm:$0xf]
    %v1101 = vld [vmem:[#allocation13 + $0x24] sm:$0xf]
    %v1102 = vld [vmem:[#allocation13 + $0x28] sm:$0xf]
    %v1103 = vld [vmem:[#allocation13 + $0x2c] sm:$0xf]
    %v1104 = vld [vmem:[#allocation13 + $0x30] sm:$0xf]
    %v1105 = vld [vmem:[#allocation13 + $0x34] sm:$0xf]
    %v1106 = vld [vmem:[#allocation13 + $0x38] sm:$0xf]
    %v1107 = vld [vmem:[#allocation13 + $0x3c] sm:$0xf]
    %v1108 = vld [vmem:[#allocation14] sm:$0xf]
    %v1109 = vld [vmem:[#allocation14 + $0x4] sm:$0xf]
    %v1110 = vld [vmem:[#allocation14 + $0x8] sm:$0xf]
    %v1111 = vld [vmem:[#allocation14 + $0xc] sm:$0xf]
    %v1112 = vld [vmem:[#allocation14 + $0x10] sm:$0xf]
    %v1113 = vld [vmem:[#allocation14 + $0x14] sm:$0xf]
    %v1114 = vld [vmem:[#allocation14 + $0x18] sm:$0xf]
    %v1115 = vld [vmem:[#allocation14 + $0x1c] sm:$0xf]
    %v1116 = vld [vmem:[#allocation14 + $0x20] sm:$0xf]
    %v1117 = vld [vmem:[#allocation14 + $0x24] sm:$0xf]
    %v1118 = vld [vmem:[#allocation14 + $0x28] sm:$0xf]
    %v1119 = vld [vmem:[#allocation14 + $0x2c] sm:$0xf]
    %v1120 = vld [vmem:[#allocation14 + $0x30] sm:$0xf]
    %v1121 = vld [vmem:[#allocation14 + $0x34] sm:$0xf]
    %v1122 = vld [vmem:[#allocation14 + $0x38] sm:$0xf]
    %v1123 = vld [vmem:[#allocation14 + $0x3c] sm:$0xf]
    %v1140 = vunpack.c.l.b16 %v1108
    %v1141 = vunpack.c.l.b16 %v1109
    %v1142 = vunpack.c.l.b16 %v1110
    %v1143 = vunpack.c.l.b16 %v1111
    %v1144 = vunpack.c.l.b16 %v1112
    %v1145 = vunpack.c.l.b16 %v1113
    %v1146 = vunpack.c.l.b16 %v1114
    %v1147 = vunpack.c.l.b16 %v1115
    %v1148 = vunpack.c.l.b16 %v1116
    %v1149 = vunpack.c.l.b16 %v1117
    %v1150 = vunpack.c.l.b16 %v1118
    %v1151 = vunpack.c.l.b16 %v1119
    %v1152 = vunpack.c.l.b16 %v1120
    %v1153 = vunpack.c.l.b16 %v1121
    %v1154 = vunpack.c.l.b16 %v1122
    %v1155 = vunpack.c.l.b16 %v1123
    %v1156 = vpack.c.b16 %v1141, %v1140
    %v1157 = vpack.c.b16 %v1143, %v1142
    %v1158 = vpack.c.b16 %v1145, %v1144
    %v1159 = vpack.c.b16 %v1147, %v1146
    %v1160 = vpack.c.b16 %v1149, %v1148
    %v1161 = vpack.c.b16 %v1151, %v1150
    %v1162 = vpack.c.b16 %v1153, %v1152
    %v1163 = vpack.c.b16 %v1155, %v1154
    %1172 = vmatprep.subr.bf16.mxu0 0
    %1173 = vmatpush1.bf16.msra.mxu0 %v1163
    %1174 = vmatprep.subr.bf16.mxu0 0
    %1175 = vmatpush1.bf16.msra.mxu0 %v1162
    %1176 = vmatprep.subr.bf16.mxu0 0
    %1177 = vmatpush1.bf16.msra.mxu0 %v1161
    %1178 = vmatprep.subr.bf16.mxu0 0
    %1179 = vmatpush1.bf16.msra.mxu0 %v1160
    %1180 = vmatprep.subr.bf16.mxu0 0
    %1181 = vmatpush1.bf16.msra.mxu0 %v1159
    %1182 = vmatprep.subr.bf16.mxu0 0
    %1183 = vmatpush1.bf16.msra.mxu0 %v1158
    %1184 = vmatprep.subr.bf16.mxu0 0
    %1185 = vmatpush1.bf16.msra.mxu0 %v1157
    %1186 = vmatprep.subr.bf16.mxu0 0
    %1187 = vmatpush1.bf16.msra.mxu0 %v1156
    %1188 = vmatprep.subr.bf16.mxu0 0
    %1189 = vmatpush2.bf16.msra.mxu0 0
    %1190 = vmatprep.subr.bf16.mxu0 0
    %1191 = vmatpush2.bf16.msra.mxu0 0
    %1192 = vmatprep.subr.bf16.mxu0 0
    %1193 = vmatpush2.bf16.msra.mxu0 0
    %1194 = vmatprep.subr.bf16.mxu0 0
    %1195 = vmatpush2.bf16.msra.mxu0 0
    %1196 = vmatprep.subr.bf16.mxu0 0
    %1197 = vmatpush2.bf16.msra.mxu0 0
    %1198 = vmatprep.subr.bf16.mxu0 0
    %1199 = vmatpush2.bf16.msra.mxu0 0
    %1200 = vmatprep.subr.bf16.mxu0 0
    %1201 = vmatpush2.bf16.msra.mxu0 0
    %1202 = vmatprep.subr.bf16.mxu0 0
    %1203 = vmatpush2.bf16.msra.mxu0 0
    %1204 = vmatprep.mubr.bf16.mxu0 0
    %1205 = vmatmul.mubr.bf16.gmra.mxu0 %v1088
    %v1206 = vpop.f32.mrf.mxu0
    %v1207 = vadd.f32 0.0, %v1206
    %v1208 = vpop.f32.mrf.mxu0
    %v1209 = vpop.f32.mrf.mxu0
    %v1210 = vadd.f32 0.0, %v1209
    %v1211 = vpop.f32.mrf.mxu0
    %1212 = vmatprep.mubr.bf16.mxu0 0
    %1213 = vmatmul.mubr.bf16.gmra.mxu0 %v1089
    %v1214 = vpop.f32.mrf.mxu0
    %v1215 = vadd.f32 0.0, %v1214
    %v1216 = vpop.f32.mrf.mxu0
    %v1217 = vpop.f32.mrf.mxu0
    %v1218 = vadd.f32 0.0, %v1217
    %v1219 = vpop.f32.mrf.mxu0
    %1220 = vmatprep.mubr.bf16.mxu0 0
    %1221 = vmatmul.mubr.bf16.gmra.mxu0 %v1090
    %v1222 = vpop.f32.mrf.mxu0
    %v1223 = vadd.f32 0.0, %v1222
    %v1224 = vpop.f32.mrf.mxu0
    %v1225 = vpop.f32.mrf.mxu0
    %v1226 = vadd.f32 0.0, %v1225
    %v1227 = vpop.f32.mrf.mxu0
    %1228 = vmatprep.mubr.bf16.mxu0 0
    %1229 = vmatmul.mubr.bf16.gmra.mxu0 %v1091
    %v1230 = vpop.f32.mrf.mxu0
    %v1231 = vadd.f32 0.0, %v1230
    %v1232 = vpop.f32.mrf.mxu0
    %v1233 = vpop.f32.mrf.mxu0
    %v1234 = vadd.f32 0.0, %v1233
    %v1235 = vpop.f32.mrf.mxu0
    %1236 = vdwg.mxu0
    %v1253 = vunpack.c.l.b16 %v1092
    %v1254 = vunpack.c.l.b16 %v1093
    %v1255 = vunpack.c.l.b16 %v1094
    %v1256 = vunpack.c.l.b16 %v1095
    %v1257 = vunpack.c.l.b16 %v1096
    %v1258 = vunpack.c.l.b16 %v1097
    %v1259 = vunpack.c.l.b16 %v1098
    %v1260 = vunpack.c.l.b16 %v1099
    %v1261 = vunpack.c.l.b16 %v1100
    %v1262 = vunpack.c.l.b16 %v1101
    %v1263 = vunpack.c.l.b16 %v1102
    %v1264 = vunpack.c.l.b16 %v1103
    %v1265 = vunpack.c.l.b16 %v1104
    %v1266 = vunpack.c.l.b16 %v1105
    %v1267 = vunpack.c.l.b16 %v1106
    %v1268 = vunpack.c.l.b16 %v1107
    %v1269 = vpack.c.b16 %v1254, %v1253
    %v1270 = vpack.c.b16 %v1256, %v1255
    %v1271 = vpack.c.b16 %v1258, %v1257
    %v1272 = vpack.c.b16 %v1260, %v1259
    %v1273 = vpack.c.b16 %v1262, %v1261
    %v1274 = vpack.c.b16 %v1264, %v1263
    %v1275 = vpack.c.b16 %v1266, %v1265
    %v1276 = vpack.c.b16 %v1268, %v1267
    %1285 = vmatprep.subr.bf16.mxu0 0
    %1286 = vmatpush1.bf16.msra.mxu0 %v1276
    %1287 = vmatprep.subr.bf16.mxu0 0
    %1288 = vmatpush1.bf16.msra.mxu0 %v1275
    %1289 = vmatprep.subr.bf16.mxu0 0
    %1290 = vmatpush1.bf16.msra.mxu0 %v1274
    %1291 = vmatprep.subr.bf16.mxu0 0
    %1292 = vmatpush1.bf16.msra.mxu0 %v1273
    %1293 = vmatprep.subr.bf16.mxu0 0
    %1294 = vmatpush1.bf16.msra.mxu0 %v1272
    %1295 = vmatprep.subr.bf16.mxu0 0
    %1296 = vmatpush1.bf16.msra.mxu0 %v1271
    %1297 = vmatprep.subr.bf16.mxu0 0
    %1298 = vmatpush1.bf16.msra.mxu0 %v1270
    %1299 = vmatprep.subr.bf16.mxu0 0
    %1300 = vmatpush1.bf16.msra.mxu0 %v1269
    %1301 = vmatprep.subr.bf16.mxu0 0
    %1302 = vmatpush2.bf16.msra.mxu0 0
    %1303 = vmatprep.subr.bf16.mxu0 0
    %1304 = vmatpush2.bf16.msra.mxu0 0
    %1305 = vmatprep.subr.bf16.mxu0 0
    %1306 = vmatpush2.bf16.msra.mxu0 0
    %1307 = vmatprep.subr.bf16.mxu0 0
    %1308 = vmatpush2.bf16.msra.mxu0 0
    %1309 = vmatprep.subr.bf16.mxu0 0
    %1310 = vmatpush2.bf16.msra.mxu0 0
    %1311 = vmatprep.subr.bf16.mxu0 0
    %1312 = vmatpush2.bf16.msra.mxu0 0
    %1313 = vmatprep.subr.bf16.mxu0 0
    %1314 = vmatpush2.bf16.msra.mxu0 0
    %1315 = vmatprep.subr.bf16.mxu0 0
    %1316 = vmatpush2.bf16.msra.mxu0 0
    %1317 = vmatprep.mubr.bf16.mxu0 0
    %1318 = vmatmul.mubr.bf16.gmra.mxu0 %v1019
    %v1319 = vpop.f32.mrf.mxu0
    %v1320 = vadd.f32 %v1207, %v1319
    %v1321 = vpop.f32.mrf.mxu0
    %v1322 = vpop.f32.mrf.mxu0
    %v1323 = vadd.f32 %v1210, %v1322
    %v1324 = vpop.f32.mrf.mxu0
    %1325 = vmatprep.mubr.bf16.mxu0 0
    %1326 = vmatmul.mubr.bf16.gmra.mxu0 %v1020
    %v1327 = vpop.f32.mrf.mxu0
    %v1328 = vadd.f32 %v1215, %v1327
    %v1329 = vpop.f32.mrf.mxu0
    %v1330 = vpop.f32.mrf.mxu0
    %v1331 = vadd.f32 %v1218, %v1330
    %v1332 = vpop.f32.mrf.mxu0
    %1333 = vmatprep.mubr.bf16.mxu0 0
    %1334 = vmatmul.mubr.bf16.gmra.mxu0 %v1021
    %v1335 = vpop.f32.mrf.mxu0
    %v1336 = vadd.f32 %v1223, %v1335
    %v1337 = vpop.f32.mrf.mxu0
    %v1338 = vpop.f32.mrf.mxu0
    %v1339 = vadd.f32 %v1226, %v1338
    %v1340 = vpop.f32.mrf.mxu0
    %1341 = vmatprep.mubr.bf16.mxu0 0
    %1342 = vmatmul.mubr.bf16.gmra.mxu0 %v1022
    %v1343 = vpop.f32.mrf.mxu0
    %v1344 = vadd.f32 %v1231, %v1343
    %v1345 = vpop.f32.mrf.mxu0
    %v1346 = vpop.f32.mrf.mxu0
    %v1347 = vadd.f32 %v1234, %v1346
    %v1348 = vpop.f32.mrf.mxu0
    %1349 = vdwg.mxu0
    %v1350 = vld [vmem:[%s12] sm:$0x1]
    %v1352 = vlaneseq
    %v1353 = vshrl.u32 %v1352, 7
    %v1354 = vsub.s32 0, %v1353
    %v1355 = vrot.slane %v1350, %v1354
    %v1357 = vadd.f32 %v1320, %v1355
    %v1358 = vadd.f32 %v1323, %v1355
    %v1359 = vadd.f32 %v1328, %v1355
    %v1360 = vadd.f32 %v1331, %v1355
    %v1361 = vadd.f32 %v1336, %v1355
    %v1362 = vadd.f32 %v1339, %v1355
    %v1363 = vadd.f32 %v1344, %v1355
    %v1364 = vadd.f32 %v1347, %v1355
    %1365 = vst [vmem:[#allocation16] sm:$0xff] %v1357
    %1366 = vst [vmem:[#allocation16 + $0x8] sm:$0xff] %v1358
    %1367 = vst [vmem:[#allocation16 + $0x10] sm:$0xff] %v1359
    %1368 = vst [vmem:[#allocation16 + $0x18] sm:$0xff] %v1360
    %1369 = vst [vmem:[#allocation16 + $0x20] sm:$0xff] %v1361
    %1370 = vst [vmem:[#allocation16 + $0x28] sm:$0xff] %v1362
    %1371 = vst [vmem:[#allocation16 + $0x30] sm:$0xff] %v1363
    %1372 = vst [vmem:[#allocation16 + $0x38] sm:$0xff] %v1364
    // Predicated region
    $region86: #{tpu_custom_call.1} parent=1 // pred_check
      _
    $region87: #{tpu_custom_call.1} parent=1 // pred_check_branch
      %1374 = sbr.rel (0) target = $region89
    $region88: #{tpu_custom_call.1} parent=1 // pred_region
      %s1376 = ssub.s32 1024, 1024
      %1377 = vsyncadd [#allocation4], %s1376
      %s1378 = sshll.u32 [#allocation16], 4
      %s1379 = int_to_ptr.vmem [resolvable:$true] %s1378
      %1384 = dma.vmem_to_hbm [thread:$0]  %s1379, 1024, %s13, [#allocation4], 128, 128, 8
    $region89: #{tpu_custom_call.1} parent=1 // pred_fallthru
      _
    // Predicated region
    $region90: #{tpu_custom_call.1} parent=1 // pred_check
      _
    $region91: #{tpu_custom_call.1} parent=1 // pred_check_branch
      %1386 = sbr.rel (0) target = $region93
    $region92: #{tpu_custom_call.1} parent=1 // pred_region
      %1387 = dma.done [#allocation4], 1024
    $region93: #{tpu_custom_call.1} parent=1 // pred_fallthru
      _
    %1388 = vsyncpa [#allocation3], 1
    %1389 = vsyncpa [#allocation6], 1
    %1390 = vsyncpa [#allocation9], 1
    %1391 = vsyncpa [#allocation12], 1
    %1392 = vsyncpa [#allocation15], 1
    %1393 = vsyncpa [#allocation4], 1

</llo_original>
